<compile_context>
chip_gen: v7x
topology: tpu7x:2x2x1
jax: 0.10.0
libtpu: 0.0.40
codegen_flags: <defaults>
</compile_context>

<pallas_src>
import functools
import math

import jax
import jax.numpy as jnp
from jax.experimental import pallas as pl
from jax.experimental.pallas import tpu as pltpu


def _mha_fusion_kernel(x_ref, wqkv_ref, bqkv_ref, wo_ref, bo_ref, o_ref,
                       *, num_heads, compute_dtype):
    N, L, E = x_ref.shape
    H = num_heads
    d = E // H

    x = x_ref[...].astype(compute_dtype).reshape(N * L, E)

    # Fused QKV projection: one wide MXU launch, f32 accumulation, single bias add.
    # (attention scale 1/sqrt(d) is already folded into the Q columns of wqkv/bqkv.)
    qkv = jnp.dot(x, wqkv_ref[...],
                  preferred_element_type=jnp.float32) + bqkv_ref[...]      # (N*L, 3E) f32

    q = qkv[:, 0:E]
    k = qkv[:, E:2 * E]
    v = qkv[:, 2 * E:3 * E]

    # (N*L, E) -> (N*H, L, d): batched heads, no per-head Python loop / concatenate.
    def to_heads(t):
        return (t.reshape(N, L, H, d)
                 .transpose(0, 2, 1, 3)
                 .reshape(N * H, L, d)
                 .astype(compute_dtype))

    qh, kh, vh = to_heads(q), to_heads(k), to_heads(v)

    # Scaled dot-product attention, batched over (batch*heads); no explicit k transpose.
    s = jnp.einsum('bqd,bkd->bqk', qh, kh,
                   preferred_element_type=jnp.float32)                     # (N*H, L, L) f32
    s = s - jnp.max(s, axis=-1, keepdims=True)
    p = jnp.exp(s)
    p = p * pl.reciprocal(jnp.sum(p, axis=-1, keepdims=True), approx=True)
    ctx = jnp.einsum('bqk,bkd->bqd', p.astype(compute_dtype), vh,
                     preferred_element_type=jnp.float32)                   # (N*H, L, d) f32

    # Back to (N, L, E); batch mean BEFORE out_proj (out_proj is linear in its input).
    attn = ctx.reshape(N, H, L, d).transpose(0, 2, 1, 3).reshape(N, L, E)
    attn_mean = jnp.sum(attn, axis=0) * (1.0 / N)                          # (L, E) f32

    y = jnp.dot(attn_mean.astype(compute_dtype), wo_ref[...],
                preferred_element_type=jnp.float32) + bo_ref[...]          # (L, E) f32
    o_ref[...] = y.astype(o_ref.dtype)


def self_attention_fusion(x_lne, params, num_heads, compute_dtype=jnp.float32):
    """x_lne: (L, N, E) float32 (PyTorch MultiheadAttention default layout).

    compute_dtype: dtype of MXU operands (jnp.float32, or jnp.bfloat16 on v6e/v7x).
    Softmax and all accumulation stay in float32.
    """
    L, N, E = x_lne.shape
    assert E % num_heads == 0
    d = E // num_heads
    scale = 1.0 / math.sqrt(d)

    x_nle = jnp.transpose(x_lne, (1, 0, 2))                     # (N, L, E)

    in_w = params["in_proj_weight"]                             # (3E, E) rows = [Wq; Wk; Wv]
    in_b = params["in_proj_bias"]                               # (3E,)
    wq_t = in_w[0:E, :].T * scale                               # fold attention scale into Q
    wk_t = in_w[E:2 * E, :].T
    wv_t = in_w[2 * E:3 * E, :].T
    w_qkv = jnp.concatenate([wq_t, wk_t, wv_t], axis=1).astype(compute_dtype)   # (E, 3E)
    b_qkv = jnp.concatenate([in_b[0:E] * scale, in_b[E:2 * E], in_b[2 * E:3 * E]]
                            ).reshape(1, 3 * E).astype(jnp.float32)             # (1, 3E)
    wo_t = params["out_proj_weight"].T.astype(compute_dtype)                    # (E, E)
    bo = params["out_proj_bias"].reshape(1, E).astype(jnp.float32)              # (1, E)

    kernel = functools.partial(_mha_fusion_kernel,
                               num_heads=num_heads, compute_dtype=compute_dtype)

    vmem_spec = pl.BlockSpec(memory_space=pltpu.MemorySpace.VMEM)
    out = pl.pallas_call(
        kernel,
        out_shape=jax.ShapeDtypeStruct((L, E), jnp.float32),
        in_specs=[vmem_spec] * 5,           # whole (tiny) arrays resident in VMEM, single step
        out_specs=vmem_spec,
        compiler_params=pltpu.CompilerParams(vmem_limit_bytes=64 * 1024 * 1024),
    )(x_nle, w_qkv, b_qkv, wo_t, bo)
    return out


def _reference(x_lne, params, num_heads):
    """Pure-JAX reference of nn.MultiheadAttention(x, x, x)[0].mean(dim=1)."""
    L, N, E = x_lne.shape
    d = E // num_heads
    in_w, in_b = params["in_proj_weight"], params["in_proj_bias"]
    wq, wk, wv = in_w[0:E], in_w[E:2 * E], in_w[2 * E:3 * E]
    bq, bk, bv = in_b[0:E], in_b[E:2 * E], in_b[2 * E:3 * E]
    q = jnp.einsum("lne,fe->lnf", x_lne, wq) + bq
    k = jnp.einsum("lne,fe->lnf", x_lne, wk) + bk
    v = jnp.einsum("lne,fe->lnf", x_lne, wv) + bv
    qh = q.reshape(L, N, num_heads, d)
    kh = k.reshape(L, N, num_heads, d)
    vh = v.reshape(L, N, num_heads, d)
    s = jnp.einsum("qnhd,knhd->nhqk", qh, kh) / math.sqrt(d)
    p = jax.nn.softmax(s, axis=-1)
    o = jnp.einsum("nhqk,knhd->qnhd", p, vh).reshape(L, N, E)
    o = jnp.einsum("lne,fe->lnf", o, params["out_proj_weight"]) + params["out_proj_bias"]
    return o.mean(axis=1)


if __name__ == "__main__":
    L, N, E, H = 8, 2, 32, 4   # seq, batch, embed_dim, num_heads

    key = jax.random.PRNGKey(0)
    k_x, k_w, k_b, k_ow, k_ob = jax.random.split(key, 5)

    x = jax.random.normal(k_x, (L, N, E), dtype=jnp.float32)
    params = {
        "in_proj_weight": jax.random.normal(k_w, (3 * E, E), dtype=jnp.float32) * 0.1,
        "in_proj_bias":   jax.random.normal(k_b, (3 * E,),   dtype=jnp.float32) * 0.1,
        "out_proj_weight": jax.random.normal(k_ow, (E, E),   dtype=jnp.float32) * 0.1,
        "out_proj_bias":   jax.random.normal(k_ob, (E,),     dtype=jnp.float32) * 0.1,
    }

    ref = _reference(x, params, H)

    # f32 MXU-operand path (v5e-friendly). Tolerance covers the approx-reciprocal softmax denom.
    out_f32 = jax.block_until_ready(self_attention_fusion(x, params, H, compute_dtype=jnp.float32))
    assert out_f32.shape == (L, E)
    assert jnp.allclose(out_f32, ref, atol=5e-3, rtol=5e-3), "f32 path mismatch vs reference"

    # bf16 MXU-operand path (v6e/v7x throughput / VMEM option); looser tolerance for bf16 operands.
    out_bf16 = jax.block_until_ready(self_attention_fusion(x, params, H, compute_dtype=jnp.bfloat16))
    assert out_bf16.shape == (L, E)
    assert jnp.allclose(out_bf16, ref, atol=1e-1, rtol=1e-1), "bf16 path mismatch vs reference"

    print("KERNEL_OK")
</pallas_src>

<mosaic_0001>
module attributes {stable_mosaic.version = 11 : i64} {
  func.func @_mha_fusion_kernel(%arg0: memref<2x8x32xf32, #tpu.memory_space<vmem>>, %arg1: memref<32x96xf32, #tpu.memory_space<vmem>>, %arg2: memref<1x96xf32, #tpu.memory_space<vmem>>, %arg3: memref<32x32xf32, #tpu.memory_space<vmem>>, %arg4: memref<1x32xf32, #tpu.memory_space<vmem>>, %arg5: memref<8x32xf32, #tpu.memory_space<vmem>>) attributes {dimension_semantics = [], scalar_prefetch = 0 : i64, scratch_operands = 0 : i64, tpu.core_type = #tpu.core_type<tc>} {
    %c0 = arith.constant 0 : index
    %c0_0 = arith.constant 0 : index
    %c0_1 = arith.constant 0 : index
    %0 = vector.load %arg0[%c0, %c0_0, %c0_1] : memref<2x8x32xf32, #tpu.memory_space<vmem>>, vector<2x8x32xf32>
    %1 = vector.shape_cast %0 : vector<2x8x32xf32> to vector<16x32xf32>
    %c0_2 = arith.constant 0 : index
    %c0_3 = arith.constant 0 : index
    %2 = vector.load %arg1[%c0_2, %c0_3] : memref<32x96xf32, #tpu.memory_space<vmem>>, vector<32x96xf32>
    %cst = arith.constant dense<0.000000e+00> : vector<16x96xf32>
    %3 = tpu.matmul %1, %2, %cst {dimension_numbers = #tpu.dot_dimension_numbers<[1], [0], [0], [1], [0, 0, 1, 1], [], []>} : vector<16x32xf32>, vector<32x96xf32>, vector<16x96xf32> -> vector<16x96xf32>
    %c0_4 = arith.constant 0 : index
    %c0_5 = arith.constant 0 : index
    %4 = vector.load %arg2[%c0_4, %c0_5] : memref<1x96xf32, #tpu.memory_space<vmem>>, vector<1x96xf32>
    %5 = vector.broadcast %4 : vector<1x96xf32> to vector<16x96xf32>
    %6 = arith.addf %3, %5 : vector<16x96xf32>
    %7 = vector.extract_strided_slice %6 {offsets = [0, 0], sizes = [16, 32], strides = [1, 1]} : vector<16x96xf32> to vector<16x32xf32>
    %8 = vector.extract_strided_slice %6 {offsets = [0, 32], sizes = [16, 32], strides = [1, 1]} : vector<16x96xf32> to vector<16x32xf32>
    %9 = vector.extract_strided_slice %6 {offsets = [0, 64], sizes = [16, 32], strides = [1, 1]} : vector<16x96xf32> to vector<16x32xf32>
    %10 = vector.shape_cast %7 : vector<16x32xf32> to vector<2x8x4x8xf32>
    %11 = tpu.transpose %10, [0, 2, 1, 3] : vector<2x8x4x8xf32> -> vector<2x4x8x8xf32>
    %12 = vector.shape_cast %11 : vector<2x4x8x8xf32> to vector<8x8x8xf32>
    %13 = vector.shape_cast %8 : vector<16x32xf32> to vector<2x8x4x8xf32>
    %14 = tpu.transpose %13, [0, 2, 1, 3] : vector<2x8x4x8xf32> -> vector<2x4x8x8xf32>
    %15 = vector.shape_cast %14 : vector<2x4x8x8xf32> to vector<8x8x8xf32>
    %16 = vector.shape_cast %9 : vector<16x32xf32> to vector<2x8x4x8xf32>
    %17 = tpu.transpose %16, [0, 2, 1, 3] : vector<2x8x4x8xf32> -> vector<2x4x8x8xf32>
    %18 = vector.shape_cast %17 : vector<2x4x8x8xf32> to vector<8x8x8xf32>
    "tpu.trace_start"() <{level = 10 : i32, message = "bqd,bkd->bqk"}> : () -> ()
    %cst_6 = arith.constant dense<0.000000e+00> : vector<8x8x8xf32>
    %19 = tpu.matmul %12, %15, %cst_6 {dimension_numbers = #tpu.dot_dimension_numbers<[2], [2], [1], [1], [0, 0, 0, 1, 1, 1], [0], [0]>} : vector<8x8x8xf32>, vector<8x8x8xf32>, vector<8x8x8xf32> -> vector<8x8x8xf32>
    "tpu.trace_stop"() : () -> ()
    %cst_7 = arith.constant dense<0xFF800000> : vector<8x8xf32>
    %20 = vector.multi_reduction <maximumf>, %19, %cst_7 [2] : vector<8x8x8xf32> to vector<8x8xf32>
    %21 = vector.shape_cast %20 : vector<8x8xf32> to vector<8x8x1xf32>
    %22 = vector.broadcast %21 : vector<8x8x1xf32> to vector<8x8x8xf32>
    %23 = arith.subf %19, %22 : vector<8x8x8xf32>
    %24 = math.exp %23 : vector<8x8x8xf32>
    %cst_8 = arith.constant dense<0.000000e+00> : vector<8x8xf32>
    %25 = vector.multi_reduction <add>, %24, %cst_8 [2] : vector<8x8x8xf32> to vector<8x8xf32>
    %26 = vector.shape_cast %25 : vector<8x8xf32> to vector<8x8x1xf32>
    %27 = tpu.reciprocal %26 {approx = true} : vector<8x8x1xf32> -> vector<8x8x1xf32>
    %28 = vector.broadcast %27 : vector<8x8x1xf32> to vector<8x8x8xf32>
    %29 = arith.mulf %24, %28 : vector<8x8x8xf32>
    "tpu.trace_start"() <{level = 10 : i32, message = "bqk,bkd->bqd"}> : () -> ()
    %cst_9 = arith.constant dense<0.000000e+00> : vector<8x8x8xf32>
    %30 = tpu.matmul %29, %18, %cst_9 {dimension_numbers = #tpu.dot_dimension_numbers<[2], [1], [1], [2], [0, 0, 0, 1, 1, 2], [0], [0]>} : vector<8x8x8xf32>, vector<8x8x8xf32>, vector<8x8x8xf32> -> vector<8x8x8xf32>
    "tpu.trace_stop"() : () -> ()
    %31 = vector.shape_cast %30 : vector<8x8x8xf32> to vector<2x4x8x8xf32>
    %32 = tpu.transpose %31, [0, 2, 1, 3] : vector<2x4x8x8xf32> -> vector<2x8x4x8xf32>
    %33 = vector.shape_cast %32 : vector<2x8x4x8xf32> to vector<2x8x32xf32>
    %cst_10 = arith.constant dense<0.000000e+00> : vector<8x32xf32>
    %34 = vector.multi_reduction <add>, %33, %cst_10 [0] : vector<2x8x32xf32> to vector<8x32xf32>
    %cst_11 = arith.constant 5.000000e-01 : f32
    %35 = vector.broadcast %cst_11 : f32 to vector<8x32xf32>
    %36 = arith.mulf %34, %35 : vector<8x32xf32>
    %c0_12 = arith.constant 0 : index
    %c0_13 = arith.constant 0 : index
    %37 = vector.load %arg3[%c0_12, %c0_13] : memref<32x32xf32, #tpu.memory_space<vmem>>, vector<32x32xf32>
    %cst_14 = arith.constant dense<0.000000e+00> : vector<8x32xf32>
    %38 = tpu.matmul %36, %37, %cst_14 {dimension_numbers = #tpu.dot_dimension_numbers<[1], [0], [0], [1], [0, 0, 1, 1], [], []>} : vector<8x32xf32>, vector<32x32xf32>, vector<8x32xf32> -> vector<8x32xf32>
    %c0_15 = arith.constant 0 : index
    %c0_16 = arith.constant 0 : index
    %39 = vector.load %arg4[%c0_15, %c0_16] : memref<1x32xf32, #tpu.memory_space<vmem>>, vector<1x32xf32>
    %40 = vector.broadcast %39 : vector<1x32xf32> to vector<8x32xf32>
    %41 = arith.addf %38, %40 : vector<8x32xf32>
    %c0_17 = arith.constant 0 : index
    %c0_18 = arith.constant 0 : index
    %42 = vector.load %arg5[%c0_17, %c0_18] : memref<8x32xf32, #tpu.memory_space<vmem>>, vector<8x32xf32>
    tpu.vector_store %arg5[%c0_17, %c0_18], %41 {strides = array<i32>} : memref<8x32xf32, #tpu.memory_space<vmem>>, vector<8x32xf32>,
    return
  }
}

</mosaic_0001>

<llo_original>
// kernel: tpu_custom_call.1
$region0: #{tpu_custom_call.1}
  #allocation0 [shape = 'u32[]', space=smem, size = 0x4, offset = 0x4, fixed_abs, tag = 'smem constant byte address 0x4 - core index']
  #allocation1 [shape = 'u32[144,128]{1,0:T(1,128)}', space=vmem, size = 0x12000, scoped, tag = 'internal scratch']
  %s0 = inlined_call_operand.hbm [shape: f32[2,8,32], index: 0, kind: input, shape index: {}]
  %s1 = inlined_call_operand.hbm [shape: f32[32,96], index: 1, kind: input, shape index: {}]
  %s2 = inlined_call_operand.hbm [shape: f32[1,96], index: 2, kind: input, shape index: {}]
  %s3 = inlined_call_operand.hbm [shape: f32[32,32], index: 3, kind: input, shape index: {}]
  %s4 = inlined_call_operand.hbm [shape: f32[1,32], index: 4, kind: input, shape index: {}]
  %s5 = inlined_call_operand.hbm [shape: f32[8,32], index: 5, kind: output, shape index: {}]
  %s6 = sld [smem:[#allocation0]]
  $region50: #{tpu_custom_call.1} parent=0
    _
  %s8 = ssub.s32 1, %s6
  %s9 = scalar_select 0, %s8, %s6
  $region1: #{tpu_custom_call.1} parent=0
    #allocation2 [shape = 'u8[8192]{0}', space=vmem, size = 0x2000, scoped, tag = 'input window, operand 0, single buffered']
    #allocation3 [shape = 's32[1]{0}', space=sflag, size = 0x4, scoped, tag = 'scoped memory for tpu_custom_call.1']
    #allocation4 [shape = 's32[1]{0}', space=sflag, size = 0x4, scoped, tag = 'scoped memory for tpu_custom_call.1']
    #allocation5 [shape = 'u8[16384]{0}', space=vmem, size = 0x4000, scoped, tag = 'input window, operand 1, single buffered']
    #allocation6 [shape = 's32[1]{0}', space=sflag, size = 0x4, scoped, tag = 'scoped memory for tpu_custom_call.1']
    #allocation7 [shape = 'u8[512]{0}', space=vmem, size = 0x400, scoped, tag = 'input window, operand 2, single buffered']
    #allocation8 [shape = 'u8[16384]{0}', space=vmem, size = 0x4000, scoped, tag = 'input window, operand 3, single buffered']
    #allocation9 [shape = 's32[1]{0}', space=sflag, size = 0x4, scoped, tag = 'scoped memory for tpu_custom_call.1']
    #allocation10 [shape = 'u8[512]{0}', space=vmem, size = 0x400, scoped, tag = 'input window, operand 4, single buffered']
    #allocation11 [shape = 'u8[4096]{0}', space=vmem, size = 0x1000, scoped, tag = 'output window, operand 0, single buffered']
    %10 = vsyncpa [#allocation3], 0
    %11 = vsyncpa [#allocation6], 0
    %12 = vsyncpa [#allocation9], 0
    %13 = vsyncpa [#allocation4], 0
    // Predicated region
    $region2: #{tpu_custom_call.1} parent=1 // pred_check
      _
    $region3: #{tpu_custom_call.1} parent=1 // pred_check_branch
      %15 = sbr.rel (0) target = $region5
    $region4: #{tpu_custom_call.1} parent=1 // pred_region
      %s17 = ssub.s32 256, 256
      %18 = vsyncadd [#allocation3], %s17
      %s19 = sshll.u32 [#allocation2], 4
      %s20 = int_to_ptr.vmem [resolvable:$true] %s19
      %25 = dma.hbm_to_vmem [thread:$0]  %s0, 256, %s20, [#allocation3], 128, 128, 8
    $region5: #{tpu_custom_call.1} parent=1 // pred_fallthru
      _
    // Predicated region
    $region6: #{tpu_custom_call.1} parent=1 // pred_check
      _
    $region7: #{tpu_custom_call.1} parent=1 // pred_check_branch
      %27 = sbr.rel (0) target = $region9
    $region8: #{tpu_custom_call.1} parent=1 // pred_region
      %s29 = ssub.s32 512, 512
      %30 = vsyncadd [#allocation6], %s29
      %s31 = sshll.u32 [#allocation5], 4
      %s32 = int_to_ptr.vmem [resolvable:$true] %s31
      %37 = dma.hbm_to_vmem [thread:$0]  %s1, 512, %s32, [#allocation6], 128, 128, 8
    $region9: #{tpu_custom_call.1} parent=1 // pred_fallthru
      _
    // Predicated region
    $region10: #{tpu_custom_call.1} parent=1 // pred_check
      _
    $region11: #{tpu_custom_call.1} parent=1 // pred_check_branch
      %39 = sbr.rel (0) target = $region13
    $region12: #{tpu_custom_call.1} parent=1 // pred_region
      %s41 = ssub.s32 16, 16
      %42 = vsyncadd [#allocation6], %s41
      %s44 = sshll.u32 [#allocation7], 4
      %s45 = int_to_ptr.vmem [resolvable:$true] %s44
      %47 = dma.hbm_to_vmem [thread:$0]  %s2, 16, %s45, [#allocation6]
    $region13: #{tpu_custom_call.1} parent=1 // pred_fallthru
      _
    // Predicated region
    $region14: #{tpu_custom_call.1} parent=1 // pred_check
      _
    $region15: #{tpu_custom_call.1} parent=1 // pred_check_branch
      %49 = sbr.rel (0) target = $region17
    $region16: #{tpu_custom_call.1} parent=1 // pred_region
      %s51 = ssub.s32 512, 512
      %52 = vsyncadd [#allocation9], %s51
      %s53 = sshll.u32 [#allocation8], 4
      %s54 = int_to_ptr.vmem [resolvable:$true] %s53
      %59 = dma.hbm_to_vmem [thread:$0]  %s3, 512, %s54, [#allocation9], 128, 128, 8
    $region17: #{tpu_custom_call.1} parent=1 // pred_fallthru
      _
    // Predicated region
    $region18: #{tpu_custom_call.1} parent=1 // pred_check
      _
    $region19: #{tpu_custom_call.1} parent=1 // pred_check_branch
      %61 = sbr.rel (0) target = $region21
    $region20: #{tpu_custom_call.1} parent=1 // pred_region
      %s63 = ssub.s32 16, 16
      %64 = vsyncadd [#allocation9], %s63
      %s66 = sshll.u32 [#allocation10], 4
      %s67 = int_to_ptr.vmem [resolvable:$true] %s66
      %69 = dma.hbm_to_vmem [thread:$0]  %s4, 16, %s67, [#allocation9]
    $region21: #{tpu_custom_call.1} parent=1 // pred_fallthru
      _
    // Predicated region
    $region22: #{tpu_custom_call.1} parent=1 // pred_check
      _
    $region23: #{tpu_custom_call.1} parent=1 // pred_check_branch
      %71 = sbr.rel (0) target = $region25
    $region24: #{tpu_custom_call.1} parent=1 // pred_region
      %72 = dma.done [#allocation3], 256
    $region25: #{tpu_custom_call.1} parent=1 // pred_fallthru
      _
    // Predicated region
    $region26: #{tpu_custom_call.1} parent=1 // pred_check
      _
    $region27: #{tpu_custom_call.1} parent=1 // pred_check_branch
      %74 = sbr.rel (0) target = $region29
    $region28: #{tpu_custom_call.1} parent=1 // pred_region
      %75 = dma.done [#allocation6], 512
    $region29: #{tpu_custom_call.1} parent=1 // pred_fallthru
      _
    // Predicated region
    $region30: #{tpu_custom_call.1} parent=1 // pred_check
      _
    $region31: #{tpu_custom_call.1} parent=1 // pred_check_branch
      %77 = sbr.rel (0) target = $region33
    $region32: #{tpu_custom_call.1} parent=1 // pred_region
      %78 = dma.done [#allocation6], 16
    $region33: #{tpu_custom_call.1} parent=1 // pred_fallthru
      _
    // Predicated region
    $region34: #{tpu_custom_call.1} parent=1 // pred_check
      _
    $region35: #{tpu_custom_call.1} parent=1 // pred_check_branch
      %80 = sbr.rel (0) target = $region37
    $region36: #{tpu_custom_call.1} parent=1 // pred_region
      %81 = dma.done [#allocation9], 512
    $region37: #{tpu_custom_call.1} parent=1 // pred_fallthru
      _
    // Predicated region
    $region38: #{tpu_custom_call.1} parent=1 // pred_check
      _
    $region39: #{tpu_custom_call.1} parent=1 // pred_check_branch
      %83 = sbr.rel (0) target = $region41
    $region40: #{tpu_custom_call.1} parent=1 // pred_region
      %84 = dma.done [#allocation9], 16
    $region41: #{tpu_custom_call.1} parent=1 // pred_fallthru
      _
    %v85 = vld [vmem:[#allocation2] sm:$0xff]
    %v86 = vld [vmem:[#allocation2 + $0x8] sm:$0xff]
    %v87 = vld [vmem:[#allocation5] sm:$0xff]
    %v88 = vld [vmem:[#allocation5 + $0x8] sm:$0xff]
    %v89 = vld [vmem:[#allocation5 + $0x10] sm:$0xff]
    %v90 = vld [vmem:[#allocation5 + $0x18] sm:$0xff]
    %v91 = vld [vmem:[#allocation7] sm:$0x1]
    %v93 = vlaneseq
    %v94 = vshrl.u32 %v93, 7
    %v95 = vsub.s32 0, %v94
    %v96 = vrot.slane %v91, %v95
    %vm98 = vcmask 261120
    %v100 = vsel %vm98, %v85, 0
    %v103 = vsel %vm98, %v86, 0
    %105 = vmatprep.subr.mxu0 0.0
    %106 = vmatpush1.msra.mxu0 %v87
    %107 = vmatprep.subr.mxu0 0.0
    %108 = vmatpush1.msra.mxu0 %v88
    %109 = vmatprep.subr.mxu0 0.0
    %110 = vmatpush1.msra.mxu0 %v89
    %111 = vmatprep.subr.mxu0 0.0
    %112 = vmatpush1.msra.mxu0 %v90
    %113 = vmatprep.subr.mxu0 0.0
    %114 = vmatpush1.msra.mxu0 0.0
    %115 = vmatprep.subr.mxu0 0.0
    %116 = vmatpush1.msra.mxu0 0.0
    %117 = vmatprep.subr.mxu0 0.0
    %118 = vmatpush1.msra.mxu0 0.0
    %119 = vmatprep.subr.mxu0 0.0
    %120 = vmatpush1.msra.mxu0 0.0
    %121 = vmatprep.subr.mxu0 0.0
    %122 = vmatpush1.msra.mxu0 0.0
    %123 = vmatprep.subr.mxu0 0.0
    %124 = vmatpush1.msra.mxu0 0.0
    %125 = vmatprep.subr.mxu0 0.0
    %126 = vmatpush1.msra.mxu0 0.0
    %127 = vmatprep.subr.mxu0 0.0
    %128 = vmatpush1.msra.mxu0 0.0
    %129 = vmatprep.subr.mxu0 0.0
    %130 = vmatpush1.msra.mxu0 0.0
    %131 = vmatprep.subr.mxu0 0.0
    %132 = vmatpush1.msra.mxu0 0.0
    %133 = vmatprep.subr.mxu0 0.0
    %134 = vmatpush1.msra.mxu0 0.0
    %135 = vmatprep.subr.mxu0 0.0
    %136 = vmatpush1.msra.mxu0 0.0
    %137 = vmatprep.subr.mxu0 0.0
    %138 = vmatpush1.msra.mxu0 0.0
    %139 = vmatprep.subr.mxu0 0.0
    %140 = vmatpush1.msra.mxu0 0.0
    %141 = vmatprep.subr.mxu0 0.0
    %142 = vmatpush1.msra.mxu0 0.0
    %143 = vmatprep.subr.mxu0 0.0
    %144 = vmatpush1.msra.mxu0 0.0
    %145 = vmatprep.subr.mxu0 0.0
    %146 = vmatpush1.msra.mxu0 0.0
    %147 = vmatprep.subr.mxu0 0.0
    %148 = vmatpush1.msra.mxu0 0.0
    %149 = vmatprep.subr.mxu0 0.0
    %150 = vmatpush1.msra.mxu0 0.0
    %151 = vmatprep.subr.mxu0 0.0
    %152 = vmatpush1.msra.mxu0 0.0
    %153 = vmatprep.subr.mxu0 0.0
    %154 = vmatpush1.msra.mxu0 0.0
    %155 = vmatprep.subr.mxu0 0.0
    %156 = vmatpush1.msra.mxu0 0.0
    %157 = vmatprep.subr.mxu0 0.0
    %158 = vmatpush1.msra.mxu0 0.0
    %159 = vmatprep.subr.mxu0 0.0
    %160 = vmatpush1.msra.mxu0 0.0
    %161 = vmatprep.subr.mxu0 0.0
    %162 = vmatpush1.msra.mxu0 0.0
    %163 = vmatprep.subr.mxu0 0.0
    %164 = vmatpush1.msra.mxu0 0.0
    %165 = vmatprep.subr.mxu0 0.0
    %166 = vmatpush1.msra.mxu0 0.0
    %167 = vmatprep.subr.mxu0 0.0
    %168 = vmatpush1.msra.mxu0 0.0
    %169 = vmatprep.mubr.f32.mxu0 0.0
    %170 = vmatmul.mubr.f32.gmra.mrb[0].mxu0 %v100
    %v171 = vpop.f32.mrb[0].mxu0
    %v172 = vadd.f32 %v96, %v171
    %v173 = vpop.f32.mrb[0].mxu0
    %174 = vmatprep.mubr.f32.mxu0 0.0
    %175 = vmatmul.mubr.f32.gmra.mrb[0].mxu0 %v103
    %v176 = vpop.f32.mrb[0].mxu0
    %v177 = vadd.f32 %v96, %v176
    %v178 = vpop.f32.mrb[0].mxu0
    %179 = vdwg.mxu0
    %182 = vrot.lane.b32.xlu0 %v172, 120
    %v183 = vpop.permute.xlu0 %182
    %184 = vrot.lane.b32.xlu0 %v177, 120
    %v185 = vpop.permute.xlu0 %184
    %188 = vrot.lane.b32.xlu0 %v172, 112
    %v189 = vpop.permute.xlu0 %188
    %190 = vrot.lane.b32.xlu0 %v177, 112
    %v191 = vpop.permute.xlu0 %190
    %194 = vrot.lane.b32.xlu0 %v172, 104
    %v195 = vpop.permute.xlu0 %194
    %196 = vrot.lane.b32.xlu0 %v177, 104
    %v197 = vpop.permute.xlu0 %196
    %v200 = vcombine.low %v172, %v189
    %v201 = vcombine.high %v172, %v189
    %v203 = vunpack.c.l.s4 1983009808
    %v204 = vunpack.c.0.s8 %v203
    %v205 = vlaneseq
    %v206 = vshrl.u32 %v205, 7
    %v207 = vsub.s32 %v204, %v206
    %v208 = vrot.slane %v200, %v207
    %v210 = vunpack.c.l.s4 1983009808
    %v211 = vunpack.c.0.s8 %v210
    %v212 = vlaneseq
    %v213 = vshrl.u32 %v212, 7
    %v214 = vsub.s32 %v211, %v213
    %v215 = vrot.slane %v201, %v214
    %v216 = vcombine.low %v183, %v195
    %v217 = vcombine.high %v183, %v195
    %v219 = vunpack.c.l.s4 1983009808
    %v220 = vunpack.c.0.s8 %v219
    %v221 = vlaneseq
    %v222 = vshrl.u32 %v221, 7
    %v223 = vsub.s32 %v220, %v222
    %v224 = vrot.slane %v216, %v223
    %v226 = vunpack.c.l.s4 1983009808
    %v227 = vunpack.c.0.s8 %v226
    %v228 = vlaneseq
    %v229 = vshrl.u32 %v228, 7
    %v230 = vsub.s32 %v227, %v229
    %v231 = vrot.slane %v217, %v230
    %v232 = vcombine.low %v208, %v224
    %v233 = vcombine.high %v208, %v224
    %v235 = vunpack.c.l.s4 1934713408
    %v236 = vunpack.c.0.s8 %v235
    %v237 = vlaneseq
    %v238 = vshrl.u32 %v237, 7
    %v239 = vsub.s32 %v236, %v238
    %v240 = vrot.slane %v232, %v239
    %v242 = vunpack.c.l.s4 1934713408
    %v243 = vunpack.c.0.s8 %v242
    %v244 = vlaneseq
    %v245 = vshrl.u32 %v244, 7
    %v246 = vsub.s32 %v243, %v245
    %v247 = vrot.slane %v233, %v246
    %v248 = vcombine.low %v215, %v231
    %v249 = vcombine.high %v215, %v231
    %v251 = vunpack.c.l.s4 1934713408
    %v252 = vunpack.c.0.s8 %v251
    %v253 = vlaneseq
    %v254 = vshrl.u32 %v253, 7
    %v255 = vsub.s32 %v252, %v254
    %v256 = vrot.slane %v248, %v255
    %v258 = vunpack.c.l.s4 1934713408
    %v259 = vunpack.c.0.s8 %v258
    %v260 = vlaneseq
    %v261 = vshrl.u32 %v260, 7
    %v262 = vsub.s32 %v259, %v261
    %v263 = vrot.slane %v249, %v262
    %v264 = vcombine.high %v240, 0.0
    %v265 = vcombine.high %v247, 0.0
    %v266 = vcombine.high %v256, 0.0
    %v267 = vcombine.high %v263, 0.0
    %v268 = vcombine.low %v177, %v191
    %v269 = vcombine.high %v177, %v191
    %v271 = vunpack.c.l.s4 1983009808
    %v272 = vunpack.c.0.s8 %v271
    %v273 = vlaneseq
    %v274 = vshrl.u32 %v273, 7
    %v275 = vsub.s32 %v272, %v274
    %v276 = vrot.slane %v268, %v275
    %v278 = vunpack.c.l.s4 1983009808
    %v279 = vunpack.c.0.s8 %v278
    %v280 = vlaneseq
    %v281 = vshrl.u32 %v280, 7
    %v282 = vsub.s32 %v279, %v281
    %v283 = vrot.slane %v269, %v282
    %v284 = vcombine.low %v185, %v197
    %v285 = vcombine.high %v185, %v197
    %v287 = vunpack.c.l.s4 1983009808
    %v288 = vunpack.c.0.s8 %v287
    %v289 = vlaneseq
    %v290 = vshrl.u32 %v289, 7
    %v291 = vsub.s32 %v288, %v290
    %v292 = vrot.slane %v284, %v291
    %v294 = vunpack.c.l.s4 1983009808
    %v295 = vunpack.c.0.s8 %v294
    %v296 = vlaneseq
    %v297 = vshrl.u32 %v296, 7
    %v298 = vsub.s32 %v295, %v297
    %v299 = vrot.slane %v285, %v298
    %v300 = vcombine.low %v276, %v292
    %v301 = vcombine.high %v276, %v292
    %v303 = vunpack.c.l.s4 1934713408
    %v304 = vunpack.c.0.s8 %v303
    %v305 = vlaneseq
    %v306 = vshrl.u32 %v305, 7
    %v307 = vsub.s32 %v304, %v306
    %v308 = vrot.slane %v300, %v307
    %v310 = vunpack.c.l.s4 1934713408
    %v311 = vunpack.c.0.s8 %v310
    %v312 = vlaneseq
    %v313 = vshrl.u32 %v312, 7
    %v314 = vsub.s32 %v311, %v313
    %v315 = vrot.slane %v301, %v314
    %v316 = vcombine.low %v283, %v299
    %v317 = vcombine.high %v283, %v299
    %v319 = vunpack.c.l.s4 1934713408
    %v320 = vunpack.c.0.s8 %v319
    %v321 = vlaneseq
    %v322 = vshrl.u32 %v321, 7
    %v323 = vsub.s32 %v320, %v322
    %v324 = vrot.slane %v316, %v323
    %v326 = vunpack.c.l.s4 1934713408
    %v327 = vunpack.c.0.s8 %v326
    %v328 = vlaneseq
    %v329 = vshrl.u32 %v328, 7
    %v330 = vsub.s32 %v327, %v329
    %v331 = vrot.slane %v317, %v330
    %v332 = vcombine.high %v308, 0.0
    %v333 = vcombine.high %v315, 0.0
    %v334 = vcombine.high %v324, 0.0
    %v335 = vcombine.high %v331, 0.0
    %v336 = vcombine.low %v240, %v247
    %v338 = vunpack.c.l.s4 1983009808
    %v339 = vunpack.c.0.s8 %v338
    %v340 = vlaneseq
    %v341 = vshrl.u32 %v340, 7
    %v342 = vsub.s32 %v339, %v341
    %v343 = vrot.slane %v336, %v342
    %v344 = vcombine.low %v264, %v265
    %v346 = vunpack.c.l.s4 1983009808
    %v347 = vunpack.c.0.s8 %v346
    %v348 = vlaneseq
    %v349 = vshrl.u32 %v348, 7
    %v350 = vsub.s32 %v347, %v349
    %v351 = vrot.slane %v344, %v350
    %v352 = vcombine.low %v256, %v263
    %v354 = vunpack.c.l.s4 1983009808
    %v355 = vunpack.c.0.s8 %v354
    %v356 = vlaneseq
    %v357 = vshrl.u32 %v356, 7
    %v358 = vsub.s32 %v355, %v357
    %v359 = vrot.slane %v352, %v358
    %v360 = vcombine.low %v266, %v267
    %v362 = vunpack.c.l.s4 1983009808
    %v363 = vunpack.c.0.s8 %v362
    %v364 = vlaneseq
    %v365 = vshrl.u32 %v364, 7
    %v366 = vsub.s32 %v363, %v365
    %v367 = vrot.slane %v360, %v366
    %v368 = vcombine.low %v343, %v351
    %v369 = vcombine.high %v343, %v351
    %v371 = vunpack.c.l.s4 1934713408
    %v372 = vunpack.c.0.s8 %v371
    %v373 = vlaneseq
    %v374 = vshrl.u32 %v373, 7
    %v375 = vsub.s32 %v372, %v374
    %v376 = vrot.slane %v368, %v375
    %v378 = vunpack.c.l.s4 1934713408
    %v379 = vunpack.c.0.s8 %v378
    %v380 = vlaneseq
    %v381 = vshrl.u32 %v380, 7
    %v382 = vsub.s32 %v379, %v381
    %v383 = vrot.slane %v369, %v382
    %v384 = vcombine.low %v359, %v367
    %v385 = vcombine.high %v359, %v367
    %v387 = vunpack.c.l.s4 1934713408
    %v388 = vunpack.c.0.s8 %v387
    %v389 = vlaneseq
    %v390 = vshrl.u32 %v389, 7
    %v391 = vsub.s32 %v388, %v390
    %v392 = vrot.slane %v384, %v391
    %v394 = vunpack.c.l.s4 1934713408
    %v395 = vunpack.c.0.s8 %v394
    %v396 = vlaneseq
    %v397 = vshrl.u32 %v396, 7
    %v398 = vsub.s32 %v395, %v397
    %v399 = vrot.slane %v385, %v398
    %v400 = vcombine.low %v376, %v392
    %v401 = vcombine.high %v376, %v392
    %v402 = vcombine.low %v383, %v399
    %v403 = vcombine.high %v383, %v399
    %v404 = vcombine.low %v308, %v315
    %v406 = vunpack.c.l.s4 1983009808
    %v407 = vunpack.c.0.s8 %v406
    %v408 = vlaneseq
    %v409 = vshrl.u32 %v408, 7
    %v410 = vsub.s32 %v407, %v409
    %v411 = vrot.slane %v404, %v410
    %v412 = vcombine.low %v332, %v333
    %v414 = vunpack.c.l.s4 1983009808
    %v415 = vunpack.c.0.s8 %v414
    %v416 = vlaneseq
    %v417 = vshrl.u32 %v416, 7
    %v418 = vsub.s32 %v415, %v417
    %v419 = vrot.slane %v412, %v418
    %v420 = vcombine.low %v324, %v331
    %v422 = vunpack.c.l.s4 1983009808
    %v423 = vunpack.c.0.s8 %v422
    %v424 = vlaneseq
    %v425 = vshrl.u32 %v424, 7
    %v426 = vsub.s32 %v423, %v425
    %v427 = vrot.slane %v420, %v426
    %v428 = vcombine.low %v334, %v335
    %v430 = vunpack.c.l.s4 1983009808
    %v431 = vunpack.c.0.s8 %v430
    %v432 = vlaneseq
    %v433 = vshrl.u32 %v432, 7
    %v434 = vsub.s32 %v431, %v433
    %v435 = vrot.slane %v428, %v434
    %v436 = vcombine.low %v411, %v419
    %v437 = vcombine.high %v411, %v419
    %v439 = vunpack.c.l.s4 1934713408
    %v440 = vunpack.c.0.s8 %v439
    %v441 = vlaneseq
    %v442 = vshrl.u32 %v441, 7
    %v443 = vsub.s32 %v440, %v442
    %v444 = vrot.slane %v436, %v443
    %v446 = vunpack.c.l.s4 1934713408
    %v447 = vunpack.c.0.s8 %v446
    %v448 = vlaneseq
    %v449 = vshrl.u32 %v448, 7
    %v450 = vsub.s32 %v447, %v449
    %v451 = vrot.slane %v437, %v450
    %v452 = vcombine.low %v427, %v435
    %v453 = vcombine.high %v427, %v435
    %v455 = vunpack.c.l.s4 1934713408
    %v456 = vunpack.c.0.s8 %v455
    %v457 = vlaneseq
    %v458 = vshrl.u32 %v457, 7
    %v459 = vsub.s32 %v456, %v458
    %v460 = vrot.slane %v452, %v459
    %v462 = vunpack.c.l.s4 1934713408
    %v463 = vunpack.c.0.s8 %v462
    %v464 = vlaneseq
    %v465 = vshrl.u32 %v464, 7
    %v466 = vsub.s32 %v463, %v465
    %v467 = vrot.slane %v453, %v466
    %v468 = vcombine.low %v444, %v460
    %v469 = vcombine.high %v444, %v460
    %v470 = vcombine.low %v451, %v467
    %v471 = vcombine.high %v451, %v467
    %472 = vrot.lane.b32.xlu0 %v172, 96
    %v473 = vpop.permute.xlu0 %472
    %474 = vrot.lane.b32.xlu0 %v177, 96
    %v475 = vpop.permute.xlu0 %474
    %476 = vrot.lane.b32.xlu0 %v183, 96
    %v477 = vpop.permute.xlu0 %476
    %478 = vrot.lane.b32.xlu0 %v185, 96
    %v479 = vpop.permute.xlu0 %478
    %480 = vrot.lane.b32.xlu0 %v189, 96
    %v481 = vpop.permute.xlu0 %480
    %482 = vrot.lane.b32.xlu0 %v191, 96
    %v483 = vpop.permute.xlu0 %482
    %484 = vrot.lane.b32.xlu0 %v195, 96
    %v485 = vpop.permute.xlu0 %484
    %486 = vrot.lane.b32.xlu0 %v197, 96
    %v487 = vpop.permute.xlu0 %486
    %v496 = vcombine.low %v473, %v481
    %v497 = vcombine.high %v473, %v481
    %v499 = vunpack.c.l.s4 1983009808
    %v500 = vunpack.c.0.s8 %v499
    %v501 = vlaneseq
    %v502 = vshrl.u32 %v501, 7
    %v503 = vsub.s32 %v500, %v502
    %v504 = vrot.slane %v496, %v503
    %v506 = vunpack.c.l.s4 1983009808
    %v507 = vunpack.c.0.s8 %v506
    %v508 = vlaneseq
    %v509 = vshrl.u32 %v508, 7
    %v510 = vsub.s32 %v507, %v509
    %v511 = vrot.slane %v497, %v510
    %v512 = vcombine.low %v477, %v485
    %v513 = vcombine.high %v477, %v485
    %v515 = vunpack.c.l.s4 1983009808
    %v516 = vunpack.c.0.s8 %v515
    %v517 = vlaneseq
    %v518 = vshrl.u32 %v517, 7
    %v519 = vsub.s32 %v516, %v518
    %v520 = vrot.slane %v512, %v519
    %v522 = vunpack.c.l.s4 1983009808
    %v523 = vunpack.c.0.s8 %v522
    %v524 = vlaneseq
    %v525 = vshrl.u32 %v524, 7
    %v526 = vsub.s32 %v523, %v525
    %v527 = vrot.slane %v513, %v526
    %v528 = vcombine.low %v504, %v520
    %v529 = vcombine.high %v504, %v520
    %v531 = vunpack.c.l.s4 1934713408
    %v532 = vunpack.c.0.s8 %v531
    %v533 = vlaneseq
    %v534 = vshrl.u32 %v533, 7
    %v535 = vsub.s32 %v532, %v534
    %v536 = vrot.slane %v528, %v535
    %v538 = vunpack.c.l.s4 1934713408
    %v539 = vunpack.c.0.s8 %v538
    %v540 = vlaneseq
    %v541 = vshrl.u32 %v540, 7
    %v542 = vsub.s32 %v539, %v541
    %v543 = vrot.slane %v529, %v542
    %v544 = vcombine.low %v511, %v527
    %v545 = vcombine.high %v511, %v527
    %v547 = vunpack.c.l.s4 1934713408
    %v548 = vunpack.c.0.s8 %v547
    %v549 = vlaneseq
    %v550 = vshrl.u32 %v549, 7
    %v551 = vsub.s32 %v548, %v550
    %v552 = vrot.slane %v544, %v551
    %v554 = vunpack.c.l.s4 1934713408
    %v555 = vunpack.c.0.s8 %v554
    %v556 = vlaneseq
    %v557 = vshrl.u32 %v556, 7
    %v558 = vsub.s32 %v555, %v557
    %v559 = vrot.slane %v545, %v558
    %v560 = vcombine.high %v536, 0.0
    %v561 = vcombine.high %v543, 0.0
    %v562 = vcombine.high %v552, 0.0
    %v563 = vcombine.high %v559, 0.0
    %v564 = vcombine.low %v475, %v483
    %v565 = vcombine.high %v475, %v483
    %v567 = vunpack.c.l.s4 1983009808
    %v568 = vunpack.c.0.s8 %v567
    %v569 = vlaneseq
    %v570 = vshrl.u32 %v569, 7
    %v571 = vsub.s32 %v568, %v570
    %v572 = vrot.slane %v564, %v571
    %v574 = vunpack.c.l.s4 1983009808
    %v575 = vunpack.c.0.s8 %v574
    %v576 = vlaneseq
    %v577 = vshrl.u32 %v576, 7
    %v578 = vsub.s32 %v575, %v577
    %v579 = vrot.slane %v565, %v578
    %v580 = vcombine.low %v479, %v487
    %v581 = vcombine.high %v479, %v487
    %v583 = vunpack.c.l.s4 1983009808
    %v584 = vunpack.c.0.s8 %v583
    %v585 = vlaneseq
    %v586 = vshrl.u32 %v585, 7
    %v587 = vsub.s32 %v584, %v586
    %v588 = vrot.slane %v580, %v587
    %v590 = vunpack.c.l.s4 1983009808
    %v591 = vunpack.c.0.s8 %v590
    %v592 = vlaneseq
    %v593 = vshrl.u32 %v592, 7
    %v594 = vsub.s32 %v591, %v593
    %v595 = vrot.slane %v581, %v594
    %v596 = vcombine.low %v572, %v588
    %v597 = vcombine.high %v572, %v588
    %v599 = vunpack.c.l.s4 1934713408
    %v600 = vunpack.c.0.s8 %v599
    %v601 = vlaneseq
    %v602 = vshrl.u32 %v601, 7
    %v603 = vsub.s32 %v600, %v602
    %v604 = vrot.slane %v596, %v603
    %v606 = vunpack.c.l.s4 1934713408
    %v607 = vunpack.c.0.s8 %v606
    %v608 = vlaneseq
    %v609 = vshrl.u32 %v608, 7
    %v610 = vsub.s32 %v607, %v609
    %v611 = vrot.slane %v597, %v610
    %v612 = vcombine.low %v579, %v595
    %v613 = vcombine.high %v579, %v595
    %v615 = vunpack.c.l.s4 1934713408
    %v616 = vunpack.c.0.s8 %v615
    %v617 = vlaneseq
    %v618 = vshrl.u32 %v617, 7
    %v619 = vsub.s32 %v616, %v618
    %v620 = vrot.slane %v612, %v619
    %v622 = vunpack.c.l.s4 1934713408
    %v623 = vunpack.c.0.s8 %v622
    %v624 = vlaneseq
    %v625 = vshrl.u32 %v624, 7
    %v626 = vsub.s32 %v623, %v625
    %v627 = vrot.slane %v613, %v626
    %v628 = vcombine.high %v604, 0.0
    %v629 = vcombine.high %v611, 0.0
    %v630 = vcombine.high %v620, 0.0
    %v631 = vcombine.high %v627, 0.0
    %v632 = vcombine.low %v536, %v543
    %v634 = vunpack.c.l.s4 1983009808
    %v635 = vunpack.c.0.s8 %v634
    %v636 = vlaneseq
    %v637 = vshrl.u32 %v636, 7
    %v638 = vsub.s32 %v635, %v637
    %v639 = vrot.slane %v632, %v638
    %v640 = vcombine.low %v560, %v561
    %v642 = vunpack.c.l.s4 1983009808
    %v643 = vunpack.c.0.s8 %v642
    %v644 = vlaneseq
    %v645 = vshrl.u32 %v644, 7
    %v646 = vsub.s32 %v643, %v645
    %v647 = vrot.slane %v640, %v646
    %v648 = vcombine.low %v552, %v559
    %v650 = vunpack.c.l.s4 1983009808
    %v651 = vunpack.c.0.s8 %v650
    %v652 = vlaneseq
    %v653 = vshrl.u32 %v652, 7
    %v654 = vsub.s32 %v651, %v653
    %v655 = vrot.slane %v648, %v654
    %v656 = vcombine.low %v562, %v563
    %v658 = vunpack.c.l.s4 1983009808
    %v659 = vunpack.c.0.s8 %v658
    %v660 = vlaneseq
    %v661 = vshrl.u32 %v660, 7
    %v662 = vsub.s32 %v659, %v661
    %v663 = vrot.slane %v656, %v662
    %v664 = vcombine.low %v639, %v647
    %v665 = vcombine.high %v639, %v647
    %v667 = vunpack.c.l.s4 1934713408
    %v668 = vunpack.c.0.s8 %v667
    %v669 = vlaneseq
    %v670 = vshrl.u32 %v669, 7
    %v671 = vsub.s32 %v668, %v670
    %v672 = vrot.slane %v664, %v671
    %v674 = vunpack.c.l.s4 1934713408
    %v675 = vunpack.c.0.s8 %v674
    %v676 = vlaneseq
    %v677 = vshrl.u32 %v676, 7
    %v678 = vsub.s32 %v675, %v677
    %v679 = vrot.slane %v665, %v678
    %v680 = vcombine.low %v655, %v663
    %v681 = vcombine.high %v655, %v663
    %v683 = vunpack.c.l.s4 1934713408
    %v684 = vunpack.c.0.s8 %v683
    %v685 = vlaneseq
    %v686 = vshrl.u32 %v685, 7
    %v687 = vsub.s32 %v684, %v686
    %v688 = vrot.slane %v680, %v687
    %v690 = vunpack.c.l.s4 1934713408
    %v691 = vunpack.c.0.s8 %v690
    %v692 = vlaneseq
    %v693 = vshrl.u32 %v692, 7
    %v694 = vsub.s32 %v691, %v693
    %v695 = vrot.slane %v681, %v694
    %v696 = vcombine.low %v672, %v688
    %v697 = vcombine.high %v672, %v688
    %v698 = vcombine.low %v679, %v695
    %v699 = vcombine.high %v679, %v695
    %v700 = vcombine.low %v604, %v611
    %v702 = vunpack.c.l.s4 1983009808
    %v703 = vunpack.c.0.s8 %v702
    %v704 = vlaneseq
    %v705 = vshrl.u32 %v704, 7
    %v706 = vsub.s32 %v703, %v705
    %v707 = vrot.slane %v700, %v706
    %v708 = vcombine.low %v628, %v629
    %v710 = vunpack.c.l.s4 1983009808
    %v711 = vunpack.c.0.s8 %v710
    %v712 = vlaneseq
    %v713 = vshrl.u32 %v712, 7
    %v714 = vsub.s32 %v711, %v713
    %v715 = vrot.slane %v708, %v714
    %v716 = vcombine.low %v620, %v627
    %v718 = vunpack.c.l.s4 1983009808
    %v719 = vunpack.c.0.s8 %v718
    %v720 = vlaneseq
    %v721 = vshrl.u32 %v720, 7
    %v722 = vsub.s32 %v719, %v721
    %v723 = vrot.slane %v716, %v722
    %v724 = vcombine.low %v630, %v631
    %v726 = vunpack.c.l.s4 1983009808
    %v727 = vunpack.c.0.s8 %v726
    %v728 = vlaneseq
    %v729 = vshrl.u32 %v728, 7
    %v730 = vsub.s32 %v727, %v729
    %v731 = vrot.slane %v724, %v730
    %v732 = vcombine.low %v707, %v715
    %v733 = vcombine.high %v707, %v715
    %v735 = vunpack.c.l.s4 1934713408
    %v736 = vunpack.c.0.s8 %v735
    %v737 = vlaneseq
    %v738 = vshrl.u32 %v737, 7
    %v739 = vsub.s32 %v736, %v738
    %v740 = vrot.slane %v732, %v739
    %v742 = vunpack.c.l.s4 1934713408
    %v743 = vunpack.c.0.s8 %v742
    %v744 = vlaneseq
    %v745 = vshrl.u32 %v744, 7
    %v746 = vsub.s32 %v743, %v745
    %v747 = vrot.slane %v733, %v746
    %v748 = vcombine.low %v723, %v731
    %v749 = vcombine.high %v723, %v731
    %v751 = vunpack.c.l.s4 1934713408
    %v752 = vunpack.c.0.s8 %v751
    %v753 = vlaneseq
    %v754 = vshrl.u32 %v753, 7
    %v755 = vsub.s32 %v752, %v754
    %v756 = vrot.slane %v748, %v755
    %v758 = vunpack.c.l.s4 1934713408
    %v759 = vunpack.c.0.s8 %v758
    %v760 = vlaneseq
    %v761 = vshrl.u32 %v760, 7
    %v762 = vsub.s32 %v759, %v761
    %v763 = vrot.slane %v749, %v762
    %v764 = vcombine.low %v740, %v756
    %v765 = vcombine.high %v740, %v756
    %v766 = vcombine.low %v747, %v763
    %v767 = vcombine.high %v747, %v763
    %768 = vrot.lane.b32.xlu0 %v172, 64
    %v769 = vpop.permute.xlu0 %768
    %770 = vrot.lane.b32.xlu0 %v177, 64
    %v771 = vpop.permute.xlu0 %770
    %772 = vrot.lane.b32.xlu0 %v183, 64
    %v773 = vpop.permute.xlu0 %772
    %774 = vrot.lane.b32.xlu0 %v185, 64
    %v775 = vpop.permute.xlu0 %774
    %776 = vrot.lane.b32.xlu0 %v189, 64
    %v777 = vpop.permute.xlu0 %776
    %778 = vrot.lane.b32.xlu0 %v191, 64
    %v779 = vpop.permute.xlu0 %778
    %780 = vrot.lane.b32.xlu0 %v195, 64
    %v781 = vpop.permute.xlu0 %780
    %782 = vrot.lane.b32.xlu0 %v197, 64
    %v783 = vpop.permute.xlu0 %782
    %v792 = vcombine.low %v769, %v777
    %v793 = vcombine.high %v769, %v777
    %v795 = vunpack.c.l.s4 1983009808
    %v796 = vunpack.c.0.s8 %v795
    %v797 = vlaneseq
    %v798 = vshrl.u32 %v797, 7
    %v799 = vsub.s32 %v796, %v798
    %v800 = vrot.slane %v792, %v799
    %v802 = vunpack.c.l.s4 1983009808
    %v803 = vunpack.c.0.s8 %v802
    %v804 = vlaneseq
    %v805 = vshrl.u32 %v804, 7
    %v806 = vsub.s32 %v803, %v805
    %v807 = vrot.slane %v793, %v806
    %v808 = vcombine.low %v773, %v781
    %v809 = vcombine.high %v773, %v781
    %v811 = vunpack.c.l.s4 1983009808
    %v812 = vunpack.c.0.s8 %v811
    %v813 = vlaneseq
    %v814 = vshrl.u32 %v813, 7
    %v815 = vsub.s32 %v812, %v814
    %v816 = vrot.slane %v808, %v815
    %v818 = vunpack.c.l.s4 1983009808
    %v819 = vunpack.c.0.s8 %v818
    %v820 = vlaneseq
    %v821 = vshrl.u32 %v820, 7
    %v822 = vsub.s32 %v819, %v821
    %v823 = vrot.slane %v809, %v822
    %v824 = vcombine.low %v800, %v816
    %v825 = vcombine.high %v800, %v816
    %v827 = vunpack.c.l.s4 1934713408
    %v828 = vunpack.c.0.s8 %v827
    %v829 = vlaneseq
    %v830 = vshrl.u32 %v829, 7
    %v831 = vsub.s32 %v828, %v830
    %v832 = vrot.slane %v824, %v831
    %v834 = vunpack.c.l.s4 1934713408
    %v835 = vunpack.c.0.s8 %v834
    %v836 = vlaneseq
    %v837 = vshrl.u32 %v836, 7
    %v838 = vsub.s32 %v835, %v837
    %v839 = vrot.slane %v825, %v838
    %v840 = vcombine.low %v807, %v823
    %v841 = vcombine.high %v807, %v823
    %v843 = vunpack.c.l.s4 1934713408
    %v844 = vunpack.c.0.s8 %v843
    %v845 = vlaneseq
    %v846 = vshrl.u32 %v845, 7
    %v847 = vsub.s32 %v844, %v846
    %v848 = vrot.slane %v840, %v847
    %v850 = vunpack.c.l.s4 1934713408
    %v851 = vunpack.c.0.s8 %v850
    %v852 = vlaneseq
    %v853 = vshrl.u32 %v852, 7
    %v854 = vsub.s32 %v851, %v853
    %v855 = vrot.slane %v841, %v854
    %v856 = vcombine.high %v832, 0.0
    %v857 = vcombine.high %v839, 0.0
    %v858 = vcombine.high %v848, 0.0
    %v859 = vcombine.high %v855, 0.0
    %v860 = vcombine.low %v771, %v779
    %v861 = vcombine.high %v771, %v779
    %v863 = vunpack.c.l.s4 1983009808
    %v864 = vunpack.c.0.s8 %v863
    %v865 = vlaneseq
    %v866 = vshrl.u32 %v865, 7
    %v867 = vsub.s32 %v864, %v866
    %v868 = vrot.slane %v860, %v867
    %v870 = vunpack.c.l.s4 1983009808
    %v871 = vunpack.c.0.s8 %v870
    %v872 = vlaneseq
    %v873 = vshrl.u32 %v872, 7
    %v874 = vsub.s32 %v871, %v873
    %v875 = vrot.slane %v861, %v874
    %v876 = vcombine.low %v775, %v783
    %v877 = vcombine.high %v775, %v783
    %v879 = vunpack.c.l.s4 1983009808
    %v880 = vunpack.c.0.s8 %v879
    %v881 = vlaneseq
    %v882 = vshrl.u32 %v881, 7
    %v883 = vsub.s32 %v880, %v882
    %v884 = vrot.slane %v876, %v883
    %v886 = vunpack.c.l.s4 1983009808
    %v887 = vunpack.c.0.s8 %v886
    %v888 = vlaneseq
    %v889 = vshrl.u32 %v888, 7
    %v890 = vsub.s32 %v887, %v889
    %v891 = vrot.slane %v877, %v890
    %v892 = vcombine.low %v868, %v884
    %v893 = vcombine.high %v868, %v884
    %v895 = vunpack.c.l.s4 1934713408
    %v896 = vunpack.c.0.s8 %v895
    %v897 = vlaneseq
    %v898 = vshrl.u32 %v897, 7
    %v899 = vsub.s32 %v896, %v898
    %v900 = vrot.slane %v892, %v899
    %v902 = vunpack.c.l.s4 1934713408
    %v903 = vunpack.c.0.s8 %v902
    %v904 = vlaneseq
    %v905 = vshrl.u32 %v904, 7
    %v906 = vsub.s32 %v903, %v905
    %v907 = vrot.slane %v893, %v906
    %v908 = vcombine.low %v875, %v891
    %v909 = vcombine.high %v875, %v891
    %v911 = vunpack.c.l.s4 1934713408
    %v912 = vunpack.c.0.s8 %v911
    %v913 = vlaneseq
    %v914 = vshrl.u32 %v913, 7
    %v915 = vsub.s32 %v912, %v914
    %v916 = vrot.slane %v908, %v915
    %v918 = vunpack.c.l.s4 1934713408
    %v919 = vunpack.c.0.s8 %v918
    %v920 = vlaneseq
    %v921 = vshrl.u32 %v920, 7
    %v922 = vsub.s32 %v919, %v921
    %v923 = vrot.slane %v909, %v922
    %v924 = vcombine.high %v900, 0.0
    %v925 = vcombine.high %v907, 0.0
    %v926 = vcombine.high %v916, 0.0
    %v927 = vcombine.high %v923, 0.0
    %v928 = vcombine.low %v832, %v839
    %v930 = vunpack.c.l.s4 1983009808
    %v931 = vunpack.c.0.s8 %v930
    %v932 = vlaneseq
    %v933 = vshrl.u32 %v932, 7
    %v934 = vsub.s32 %v931, %v933
    %v935 = vrot.slane %v928, %v934
    %v936 = vcombine.low %v856, %v857
    %v938 = vunpack.c.l.s4 1983009808
    %v939 = vunpack.c.0.s8 %v938
    %v940 = vlaneseq
    %v941 = vshrl.u32 %v940, 7
    %v942 = vsub.s32 %v939, %v941
    %v943 = vrot.slane %v936, %v942
    %v944 = vcombine.low %v848, %v855
    %v946 = vunpack.c.l.s4 1983009808
    %v947 = vunpack.c.0.s8 %v946
    %v948 = vlaneseq
    %v949 = vshrl.u32 %v948, 7
    %v950 = vsub.s32 %v947, %v949
    %v951 = vrot.slane %v944, %v950
    %v952 = vcombine.low %v858, %v859
    %v954 = vunpack.c.l.s4 1983009808
    %v955 = vunpack.c.0.s8 %v954
    %v956 = vlaneseq
    %v957 = vshrl.u32 %v956, 7
    %v958 = vsub.s32 %v955, %v957
    %v959 = vrot.slane %v952, %v958
    %v960 = vcombine.low %v935, %v943
    %v961 = vcombine.high %v935, %v943
    %v963 = vunpack.c.l.s4 1934713408
    %v964 = vunpack.c.0.s8 %v963
    %v965 = vlaneseq
    %v966 = vshrl.u32 %v965, 7
    %v967 = vsub.s32 %v964, %v966
    %v968 = vrot.slane %v960, %v967
    %v970 = vunpack.c.l.s4 1934713408
    %v971 = vunpack.c.0.s8 %v970
    %v972 = vlaneseq
    %v973 = vshrl.u32 %v972, 7
    %v974 = vsub.s32 %v971, %v973
    %v975 = vrot.slane %v961, %v974
    %v976 = vcombine.low %v951, %v959
    %v977 = vcombine.high %v951, %v959
    %v979 = vunpack.c.l.s4 1934713408
    %v980 = vunpack.c.0.s8 %v979
    %v981 = vlaneseq
    %v982 = vshrl.u32 %v981, 7
    %v983 = vsub.s32 %v980, %v982
    %v984 = vrot.slane %v976, %v983
    %v986 = vunpack.c.l.s4 1934713408
    %v987 = vunpack.c.0.s8 %v986
    %v988 = vlaneseq
    %v989 = vshrl.u32 %v988, 7
    %v990 = vsub.s32 %v987, %v989
    %v991 = vrot.slane %v977, %v990
    %v992 = vcombine.low %v968, %v984
    %v993 = vcombine.high %v968, %v984
    %v994 = vcombine.low %v975, %v991
    %v995 = vcombine.high %v975, %v991
    %v996 = vcombine.low %v900, %v907
    %v998 = vunpack.c.l.s4 1983009808
    %v999 = vunpack.c.0.s8 %v998
    %v1000 = vlaneseq
    %v1001 = vshrl.u32 %v1000, 7
    %v1002 = vsub.s32 %v999, %v1001
    %v1003 = vrot.slane %v996, %v1002
    %v1004 = vcombine.low %v924, %v925
    %v1006 = vunpack.c.l.s4 1983009808
    %v1007 = vunpack.c.0.s8 %v1006
    %v1008 = vlaneseq
    %v1009 = vshrl.u32 %v1008, 7
    %v1010 = vsub.s32 %v1007, %v1009
    %v1011 = vrot.slane %v1004, %v1010
    %v1012 = vcombine.low %v916, %v923
    %v1014 = vunpack.c.l.s4 1983009808
    %v1015 = vunpack.c.0.s8 %v1014
    %v1016 = vlaneseq
    %v1017 = vshrl.u32 %v1016, 7
    %v1018 = vsub.s32 %v1015, %v1017
    %v1019 = vrot.slane %v1012, %v1018
    %v1020 = vcombine.low %v926, %v927
    %v1022 = vunpack.c.l.s4 1983009808
    %v1023 = vunpack.c.0.s8 %v1022
    %v1024 = vlaneseq
    %v1025 = vshrl.u32 %v1024, 7
    %v1026 = vsub.s32 %v1023, %v1025
    %v1027 = vrot.slane %v1020, %v1026
    %v1028 = vcombine.low %v1003, %v1011
    %v1029 = vcombine.high %v1003, %v1011
    %v1031 = vunpack.c.l.s4 1934713408
    %v1032 = vunpack.c.0.s8 %v1031
    %v1033 = vlaneseq
    %v1034 = vshrl.u32 %v1033, 7
    %v1035 = vsub.s32 %v1032, %v1034
    %v1036 = vrot.slane %v1028, %v1035
    %v1038 = vunpack.c.l.s4 1934713408
    %v1039 = vunpack.c.0.s8 %v1038
    %v1040 = vlaneseq
    %v1041 = vshrl.u32 %v1040, 7
    %v1042 = vsub.s32 %v1039, %v1041
    %v1043 = vrot.slane %v1029, %v1042
    %v1044 = vcombine.low %v1019, %v1027
    %v1045 = vcombine.high %v1019, %v1027
    %v1047 = vunpack.c.l.s4 1934713408
    %v1048 = vunpack.c.0.s8 %v1047
    %v1049 = vlaneseq
    %v1050 = vshrl.u32 %v1049, 7
    %v1051 = vsub.s32 %v1048, %v1050
    %v1052 = vrot.slane %v1044, %v1051
    %v1054 = vunpack.c.l.s4 1934713408
    %v1055 = vunpack.c.0.s8 %v1054
    %v1056 = vlaneseq
    %v1057 = vshrl.u32 %v1056, 7
    %v1058 = vsub.s32 %v1055, %v1057
    %v1059 = vrot.slane %v1045, %v1058
    %v1060 = vcombine.low %v1036, %v1052
    %v1061 = vcombine.high %v1036, %v1052
    %v1062 = vcombine.low %v1043, %v1059
    %v1063 = vcombine.high %v1043, %v1059
    %vm1064 = vcmask 64512
    %v1066 = vsel %vm1064, %v400, 0
    %v1069 = vsel %vm1064, %v696, 0
    %1071 = vmatprep.subr.mxu0 0.0
    %1072 = vmatpush1.xpose.msra.mxu0 %v1069
    %1073 = vmatprep.subr.mxu0 0.0
    %1074 = vmatpush1.xpose.msra.mxu0 0.0
    %1075 = vmatprep.subr.mxu0 0.0
    %1076 = vmatpush1.xpose.msra.mxu0 0.0
    %1077 = vmatprep.subr.mxu0 0.0
    %1078 = vmatpush1.xpose.msra.mxu0 0.0
    %1079 = vmatprep.subr.mxu0 0.0
    %1080 = vmatpush1.xpose.msra.mxu0 0.0
    %1081 = vmatprep.subr.mxu0 0.0
    %1082 = vmatpush1.xpose.msra.mxu0 0.0
    %1083 = vmatprep.subr.mxu0 0.0
    %1084 = vmatpush1.xpose.msra.mxu0 0.0
    %1085 = vmatprep.subr.mxu0 0.0
    %1086 = vmatpush1.xpose.msra.mxu0 0.0
    %1087 = vmatprep.subr.mxu0 0.0
    %1088 = vmatpush1.xpose.msra.mxu0 0.0
    %1089 = vmatprep.subr.mxu0 0.0
    %1090 = vmatpush1.xpose.msra.mxu0 0.0
    %1091 = vmatprep.subr.mxu0 0.0
    %1092 = vmatpush1.xpose.msra.mxu0 0.0
    %1093 = vmatprep.subr.mxu0 0.0
    %1094 = vmatpush1.xpose.msra.mxu0 0.0
    %1095 = vmatprep.subr.mxu0 0.0
    %1096 = vmatpush1.xpose.msra.mxu0 0.0
    %1097 = vmatprep.subr.mxu0 0.0
    %1098 = vmatpush1.xpose.msra.mxu0 0.0
    %1099 = vmatprep.subr.mxu0 0.0
    %1100 = vmatpush1.xpose.msra.mxu0 0.0
    %1101 = vmatprep.subr.mxu0 0.0
    %1102 = vmatpush1.xpose.msra.mxu0 0.0
    %1103 = vmatprep.subr.mxu0 0.0
    %1104 = vmatpush1.xpose.msra.mxu0 0.0
    %1105 = vmatprep.subr.mxu0 0.0
    %1106 = vmatpush1.xpose.msra.mxu0 0.0
    %1107 = vmatprep.subr.mxu0 0.0
    %1108 = vmatpush1.xpose.msra.mxu0 0.0
    %1109 = vmatprep.subr.mxu0 0.0
    %1110 = vmatpush1.xpose.msra.mxu0 0.0
    %1111 = vmatprep.subr.mxu0 0.0
    %1112 = vmatpush1.xpose.msra.mxu0 0.0
    %1113 = vmatprep.subr.mxu0 0.0
    %1114 = vmatpush1.xpose.msra.mxu0 0.0
    %1115 = vmatprep.subr.mxu0 0.0
    %1116 = vmatpush1.xpose.msra.mxu0 0.0
    %1117 = vmatprep.subr.mxu0 0.0
    %1118 = vmatpush1.xpose.msra.mxu0 0.0
    %1119 = vmatprep.subr.mxu0 0.0
    %1120 = vmatpush1.xpose.msra.mxu0 0.0
    %1121 = vmatprep.subr.mxu0 0.0
    %1122 = vmatpush1.xpose.msra.mxu0 0.0
    %1123 = vmatprep.subr.mxu0 0.0
    %1124 = vmatpush1.xpose.msra.mxu0 0.0
    %1125 = vmatprep.subr.mxu0 0.0
    %1126 = vmatpush1.xpose.msra.mxu0 0.0
    %1127 = vmatprep.subr.mxu0 0.0
    %1128 = vmatpush1.xpose.msra.mxu0 0.0
    %1129 = vmatprep.subr.mxu0 0.0
    %1130 = vmatpush1.xpose.msra.mxu0 0.0
    %1131 = vmatprep.subr.mxu0 0.0
    %1132 = vmatpush1.xpose.msra.mxu0 0.0
    %1133 = vmatprep.subr.mxu0 0.0
    %1134 = vmatpush1.xpose.msra.mxu0 0.0
    %1135 = vmatprep.mubr.f32.mxu0 0.0
    %1136 = vmatmul.mubr.f32.gmra.mrb[0].mxu0 %v1066
    %v1137 = vpop.f32.mrb[0].mxu0
    %v1138 = vadd.f32 0.0, %v1137
    %v1139 = vpop.f32.mrb[0].mxu0
    %1140 = vdwg.mxu0
    %v1142 = vsel %vm1064, %v401, 0
    %v1145 = vsel %vm1064, %v697, 0
    %1147 = vmatprep.subr.mxu0 0.0
    %1148 = vmatpush1.xpose.msra.mxu0 %v1145
    %1149 = vmatprep.subr.mxu0 0.0
    %1150 = vmatpush1.xpose.msra.mxu0 0.0
    %1151 = vmatprep.subr.mxu0 0.0
    %1152 = vmatpush1.xpose.msra.mxu0 0.0
    %1153 = vmatprep.subr.mxu0 0.0
    %1154 = vmatpush1.xpose.msra.mxu0 0.0
    %1155 = vmatprep.subr.mxu0 0.0
    %1156 = vmatpush1.xpose.msra.mxu0 0.0
    %1157 = vmatprep.subr.mxu0 0.0
    %1158 = vmatpush1.xpose.msra.mxu0 0.0
    %1159 = vmatprep.subr.mxu0 0.0
    %1160 = vmatpush1.xpose.msra.mxu0 0.0
    %1161 = vmatprep.subr.mxu0 0.0
    %1162 = vmatpush1.xpose.msra.mxu0 0.0
    %1163 = vmatprep.subr.mxu0 0.0
    %1164 = vmatpush1.xpose.msra.mxu0 0.0
    %1165 = vmatprep.subr.mxu0 0.0
    %1166 = vmatpush1.xpose.msra.mxu0 0.0
    %1167 = vmatprep.subr.mxu0 0.0
    %1168 = vmatpush1.xpose.msra.mxu0 0.0
    %1169 = vmatprep.subr.mxu0 0.0
    %1170 = vmatpush1.xpose.msra.mxu0 0.0
    %1171 = vmatprep.subr.mxu0 0.0
    %1172 = vmatpush1.xpose.msra.mxu0 0.0
    %1173 = vmatprep.subr.mxu0 0.0
    %1174 = vmatpush1.xpose.msra.mxu0 0.0
    %1175 = vmatprep.subr.mxu0 0.0
    %1176 = vmatpush1.xpose.msra.mxu0 0.0
    %1177 = vmatprep.subr.mxu0 0.0
    %1178 = vmatpush1.xpose.msra.mxu0 0.0
    %1179 = vmatprep.subr.mxu0 0.0
    %1180 = vmatpush1.xpose.msra.mxu0 0.0
    %1181 = vmatprep.subr.mxu0 0.0
    %1182 = vmatpush1.xpose.msra.mxu0 0.0
    %1183 = vmatprep.subr.mxu0 0.0
    %1184 = vmatpush1.xpose.msra.mxu0 0.0
    %1185 = vmatprep.subr.mxu0 0.0
    %1186 = vmatpush1.xpose.msra.mxu0 0.0
    %1187 = vmatprep.subr.mxu0 0.0
    %1188 = vmatpush1.xpose.msra.mxu0 0.0
    %1189 = vmatprep.subr.mxu0 0.0
    %1190 = vmatpush1.xpose.msra.mxu0 0.0
    %1191 = vmatprep.subr.mxu0 0.0
    %1192 = vmatpush1.xpose.msra.mxu0 0.0
    %1193 = vmatprep.subr.mxu0 0.0
    %1194 = vmatpush1.xpose.msra.mxu0 0.0
    %1195 = vmatprep.subr.mxu0 0.0
    %1196 = vmatpush1.xpose.msra.mxu0 0.0
    %1197 = vmatprep.subr.mxu0 0.0
    %1198 = vmatpush1.xpose.msra.mxu0 0.0
    %1199 = vmatprep.subr.mxu0 0.0
    %1200 = vmatpush1.xpose.msra.mxu0 0.0
    %1201 = vmatprep.subr.mxu0 0.0
    %1202 = vmatpush1.xpose.msra.mxu0 0.0
    %1203 = vmatprep.subr.mxu0 0.0
    %1204 = vmatpush1.xpose.msra.mxu0 0.0
    %1205 = vmatprep.subr.mxu0 0.0
    %1206 = vmatpush1.xpose.msra.mxu0 0.0
    %1207 = vmatprep.subr.mxu0 0.0
    %1208 = vmatpush1.xpose.msra.mxu0 0.0
    %1209 = vmatprep.subr.mxu0 0.0
    %1210 = vmatpush1.xpose.msra.mxu0 0.0
    %1211 = vmatprep.mubr.f32.mxu0 0.0
    %1212 = vmatmul.mubr.f32.gmra.mrb[0].mxu0 %v1142
    %v1213 = vpop.f32.mrb[0].mxu0
    %v1214 = vadd.f32 0.0, %v1213
    %v1215 = vpop.f32.mrb[0].mxu0
    %1216 = vdwg.mxu0
    %v1218 = vsel %vm1064, %v402, 0
    %v1221 = vsel %vm1064, %v698, 0
    %1223 = vmatprep.subr.mxu0 0.0
    %1224 = vmatpush1.xpose.msra.mxu0 %v1221
    %1225 = vmatprep.subr.mxu0 0.0
    %1226 = vmatpush1.xpose.msra.mxu0 0.0
    %1227 = vmatprep.subr.mxu0 0.0
    %1228 = vmatpush1.xpose.msra.mxu0 0.0
    %1229 = vmatprep.subr.mxu0 0.0
    %1230 = vmatpush1.xpose.msra.mxu0 0.0
    %1231 = vmatprep.subr.mxu0 0.0
    %1232 = vmatpush1.xpose.msra.mxu0 0.0
    %1233 = vmatprep.subr.mxu0 0.0
    %1234 = vmatpush1.xpose.msra.mxu0 0.0
    %1235 = vmatprep.subr.mxu0 0.0
    %1236 = vmatpush1.xpose.msra.mxu0 0.0
    %1237 = vmatprep.subr.mxu0 0.0
    %1238 = vmatpush1.xpose.msra.mxu0 0.0
    %1239 = vmatprep.subr.mxu0 0.0
    %1240 = vmatpush1.xpose.msra.mxu0 0.0
    %1241 = vmatprep.subr.mxu0 0.0
    %1242 = vmatpush1.xpose.msra.mxu0 0.0
    %1243 = vmatprep.subr.mxu0 0.0
    %1244 = vmatpush1.xpose.msra.mxu0 0.0
    %1245 = vmatprep.subr.mxu0 0.0
    %1246 = vmatpush1.xpose.msra.mxu0 0.0
    %1247 = vmatprep.subr.mxu0 0.0
    %1248 = vmatpush1.xpose.msra.mxu0 0.0
    %1249 = vmatprep.subr.mxu0 0.0
    %1250 = vmatpush1.xpose.msra.mxu0 0.0
    %1251 = vmatprep.subr.mxu0 0.0
    %1252 = vmatpush1.xpose.msra.mxu0 0.0
    %1253 = vmatprep.subr.mxu0 0.0
    %1254 = vmatpush1.xpose.msra.mxu0 0.0
    %1255 = vmatprep.subr.mxu0 0.0
    %1256 = vmatpush1.xpose.msra.mxu0 0.0
    %1257 = vmatprep.subr.mxu0 0.0
    %1258 = vmatpush1.xpose.msra.mxu0 0.0
    %1259 = vmatprep.subr.mxu0 0.0
    %1260 = vmatpush1.xpose.msra.mxu0 0.0
    %1261 = vmatprep.subr.mxu0 0.0
    %1262 = vmatpush1.xpose.msra.mxu0 0.0
    %1263 = vmatprep.subr.mxu0 0.0
    %1264 = vmatpush1.xpose.msra.mxu0 0.0
    %1265 = vmatprep.subr.mxu0 0.0
    %1266 = vmatpush1.xpose.msra.mxu0 0.0
    %1267 = vmatprep.subr.mxu0 0.0
    %1268 = vmatpush1.xpose.msra.mxu0 0.0
    %1269 = vmatprep.subr.mxu0 0.0
    %1270 = vmatpush1.xpose.msra.mxu0 0.0
    %1271 = vmatprep.subr.mxu0 0.0
    %1272 = vmatpush1.xpose.msra.mxu0 0.0
    %1273 = vmatprep.subr.mxu0 0.0
    %1274 = vmatpush1.xpose.msra.mxu0 0.0
    %1275 = vmatprep.subr.mxu0 0.0
    %1276 = vmatpush1.xpose.msra.mxu0 0.0
    %1277 = vmatprep.subr.mxu0 0.0
    %1278 = vmatpush1.xpose.msra.mxu0 0.0
    %1279 = vmatprep.subr.mxu0 0.0
    %1280 = vmatpush1.xpose.msra.mxu0 0.0
    %1281 = vmatprep.subr.mxu0 0.0
    %1282 = vmatpush1.xpose.msra.mxu0 0.0
    %1283 = vmatprep.subr.mxu0 0.0
    %1284 = vmatpush1.xpose.msra.mxu0 0.0
    %1285 = vmatprep.subr.mxu0 0.0
    %1286 = vmatpush1.xpose.msra.mxu0 0.0
    %1287 = vmatprep.mubr.f32.mxu0 0.0
    %1288 = vmatmul.mubr.f32.gmra.mrb[0].mxu0 %v1218
    %v1289 = vpop.f32.mrb[0].mxu0
    %v1290 = vadd.f32 0.0, %v1289
    %v1291 = vpop.f32.mrb[0].mxu0
    %1292 = vdwg.mxu0
    %v1294 = vsel %vm1064, %v403, 0
    %v1297 = vsel %vm1064, %v699, 0
    %1299 = vmatprep.subr.mxu0 0.0
    %1300 = vmatpush1.xpose.msra.mxu0 %v1297
    %1301 = vmatprep.subr.mxu0 0.0
    %1302 = vmatpush1.xpose.msra.mxu0 0.0
    %1303 = vmatprep.subr.mxu0 0.0
    %1304 = vmatpush1.xpose.msra.mxu0 0.0
    %1305 = vmatprep.subr.mxu0 0.0
    %1306 = vmatpush1.xpose.msra.mxu0 0.0
    %1307 = vmatprep.subr.mxu0 0.0
    %1308 = vmatpush1.xpose.msra.mxu0 0.0
    %1309 = vmatprep.subr.mxu0 0.0
    %1310 = vmatpush1.xpose.msra.mxu0 0.0
    %1311 = vmatprep.subr.mxu0 0.0
    %1312 = vmatpush1.xpose.msra.mxu0 0.0
    %1313 = vmatprep.subr.mxu0 0.0
    %1314 = vmatpush1.xpose.msra.mxu0 0.0
    %1315 = vmatprep.subr.mxu0 0.0
    %1316 = vmatpush1.xpose.msra.mxu0 0.0
    %1317 = vmatprep.subr.mxu0 0.0
    %1318 = vmatpush1.xpose.msra.mxu0 0.0
    %1319 = vmatprep.subr.mxu0 0.0
    %1320 = vmatpush1.xpose.msra.mxu0 0.0
    %1321 = vmatprep.subr.mxu0 0.0
    %1322 = vmatpush1.xpose.msra.mxu0 0.0
    %1323 = vmatprep.subr.mxu0 0.0
    %1324 = vmatpush1.xpose.msra.mxu0 0.0
    %1325 = vmatprep.subr.mxu0 0.0
    %1326 = vmatpush1.xpose.msra.mxu0 0.0
    %1327 = vmatprep.subr.mxu0 0.0
    %1328 = vmatpush1.xpose.msra.mxu0 0.0
    %1329 = vmatprep.subr.mxu0 0.0
    %1330 = vmatpush1.xpose.msra.mxu0 0.0
    %1331 = vmatprep.subr.mxu0 0.0
    %1332 = vmatpush1.xpose.msra.mxu0 0.0
    %1333 = vmatprep.subr.mxu0 0.0
    %1334 = vmatpush1.xpose.msra.mxu0 0.0
    %1335 = vmatprep.subr.mxu0 0.0
    %1336 = vmatpush1.xpose.msra.mxu0 0.0
    %1337 = vmatprep.subr.mxu0 0.0
    %1338 = vmatpush1.xpose.msra.mxu0 0.0
    %1339 = vmatprep.subr.mxu0 0.0
    %1340 = vmatpush1.xpose.msra.mxu0 0.0
    %1341 = vmatprep.subr.mxu0 0.0
    %1342 = vmatpush1.xpose.msra.mxu0 0.0
    %1343 = vmatprep.subr.mxu0 0.0
    %1344 = vmatpush1.xpose.msra.mxu0 0.0
    %1345 = vmatprep.subr.mxu0 0.0
    %1346 = vmatpush1.xpose.msra.mxu0 0.0
    %1347 = vmatprep.subr.mxu0 0.0
    %1348 = vmatpush1.xpose.msra.mxu0 0.0
    %1349 = vmatprep.subr.mxu0 0.0
    %1350 = vmatpush1.xpose.msra.mxu0 0.0
    %1351 = vmatprep.subr.mxu0 0.0
    %1352 = vmatpush1.xpose.msra.mxu0 0.0
    %1353 = vmatprep.subr.mxu0 0.0
    %1354 = vmatpush1.xpose.msra.mxu0 0.0
    %1355 = vmatprep.subr.mxu0 0.0
    %1356 = vmatpush1.xpose.msra.mxu0 0.0
    %1357 = vmatprep.subr.mxu0 0.0
    %1358 = vmatpush1.xpose.msra.mxu0 0.0
    %1359 = vmatprep.subr.mxu0 0.0
    %1360 = vmatpush1.xpose.msra.mxu0 0.0
    %1361 = vmatprep.subr.mxu0 0.0
    %1362 = vmatpush1.xpose.msra.mxu0 0.0
    %1363 = vmatprep.mubr.f32.mxu0 0.0
    %1364 = vmatmul.mubr.f32.gmra.mrb[0].mxu0 %v1294
    %v1365 = vpop.f32.mrb[0].mxu0
    %v1366 = vadd.f32 0.0, %v1365
    %v1367 = vpop.f32.mrb[0].mxu0
    %1368 = vdwg.mxu0
    %v1370 = vsel %vm1064, %v468, 0
    %v1373 = vsel %vm1064, %v764, 0
    %1375 = vmatprep.subr.mxu0 0.0
    %1376 = vmatpush1.xpose.msra.mxu0 %v1373
    %1377 = vmatprep.subr.mxu0 0.0
    %1378 = vmatpush1.xpose.msra.mxu0 0.0
    %1379 = vmatprep.subr.mxu0 0.0
    %1380 = vmatpush1.xpose.msra.mxu0 0.0
    %1381 = vmatprep.subr.mxu0 0.0
    %1382 = vmatpush1.xpose.msra.mxu0 0.0
    %1383 = vmatprep.subr.mxu0 0.0
    %1384 = vmatpush1.xpose.msra.mxu0 0.0
    %1385 = vmatprep.subr.mxu0 0.0
    %1386 = vmatpush1.xpose.msra.mxu0 0.0
    %1387 = vmatprep.subr.mxu0 0.0
    %1388 = vmatpush1.xpose.msra.mxu0 0.0
    %1389 = vmatprep.subr.mxu0 0.0
    %1390 = vmatpush1.xpose.msra.mxu0 0.0
    %1391 = vmatprep.subr.mxu0 0.0
    %1392 = vmatpush1.xpose.msra.mxu0 0.0
    %1393 = vmatprep.subr.mxu0 0.0
    %1394 = vmatpush1.xpose.msra.mxu0 0.0
    %1395 = vmatprep.subr.mxu0 0.0
    %1396 = vmatpush1.xpose.msra.mxu0 0.0
    %1397 = vmatprep.subr.mxu0 0.0
    %1398 = vmatpush1.xpose.msra.mxu0 0.0
    %1399 = vmatprep.subr.mxu0 0.0
    %1400 = vmatpush1.xpose.msra.mxu0 0.0
    %1401 = vmatprep.subr.mxu0 0.0
    %1402 = vmatpush1.xpose.msra.mxu0 0.0
    %1403 = vmatprep.subr.mxu0 0.0
    %1404 = vmatpush1.xpose.msra.mxu0 0.0
    %1405 = vmatprep.subr.mxu0 0.0
    %1406 = vmatpush1.xpose.msra.mxu0 0.0
    %1407 = vmatprep.subr.mxu0 0.0
    %1408 = vmatpush1.xpose.msra.mxu0 0.0
    %1409 = vmatprep.subr.mxu0 0.0
    %1410 = vmatpush1.xpose.msra.mxu0 0.0
    %1411 = vmatprep.subr.mxu0 0.0
    %1412 = vmatpush1.xpose.msra.mxu0 0.0
    %1413 = vmatprep.subr.mxu0 0.0
    %1414 = vmatpush1.xpose.msra.mxu0 0.0
    %1415 = vmatprep.subr.mxu0 0.0
    %1416 = vmatpush1.xpose.msra.mxu0 0.0
    %1417 = vmatprep.subr.mxu0 0.0
    %1418 = vmatpush1.xpose.msra.mxu0 0.0
    %1419 = vmatprep.subr.mxu0 0.0
    %1420 = vmatpush1.xpose.msra.mxu0 0.0
    %1421 = vmatprep.subr.mxu0 0.0
    %1422 = vmatpush1.xpose.msra.mxu0 0.0
    %1423 = vmatprep.subr.mxu0 0.0
    %1424 = vmatpush1.xpose.msra.mxu0 0.0
    %1425 = vmatprep.subr.mxu0 0.0
    %1426 = vmatpush1.xpose.msra.mxu0 0.0
    %1427 = vmatprep.subr.mxu0 0.0
    %1428 = vmatpush1.xpose.msra.mxu0 0.0
    %1429 = vmatprep.subr.mxu0 0.0
    %1430 = vmatpush1.xpose.msra.mxu0 0.0
    %1431 = vmatprep.subr.mxu0 0.0
    %1432 = vmatpush1.xpose.msra.mxu0 0.0
    %1433 = vmatprep.subr.mxu0 0.0
    %1434 = vmatpush1.xpose.msra.mxu0 0.0
    %1435 = vmatprep.subr.mxu0 0.0
    %1436 = vmatpush1.xpose.msra.mxu0 0.0
    %1437 = vmatprep.subr.mxu0 0.0
    %1438 = vmatpush1.xpose.msra.mxu0 0.0
    %1439 = vmatprep.mubr.f32.mxu0 0.0
    %1440 = vmatmul.mubr.f32.gmra.mrb[0].mxu0 %v1370
    %v1441 = vpop.f32.mrb[0].mxu0
    %v1442 = vadd.f32 0.0, %v1441
    %v1443 = vpop.f32.mrb[0].mxu0
    %1444 = vdwg.mxu0
    %v1446 = vsel %vm1064, %v469, 0
    %v1449 = vsel %vm1064, %v765, 0
    %1451 = vmatprep.subr.mxu0 0.0
    %1452 = vmatpush1.xpose.msra.mxu0 %v1449
    %1453 = vmatprep.subr.mxu0 0.0
    %1454 = vmatpush1.xpose.msra.mxu0 0.0
    %1455 = vmatprep.subr.mxu0 0.0
    %1456 = vmatpush1.xpose.msra.mxu0 0.0
    %1457 = vmatprep.subr.mxu0 0.0
    %1458 = vmatpush1.xpose.msra.mxu0 0.0
    %1459 = vmatprep.subr.mxu0 0.0
    %1460 = vmatpush1.xpose.msra.mxu0 0.0
    %1461 = vmatprep.subr.mxu0 0.0
    %1462 = vmatpush1.xpose.msra.mxu0 0.0
    %1463 = vmatprep.subr.mxu0 0.0
    %1464 = vmatpush1.xpose.msra.mxu0 0.0
    %1465 = vmatprep.subr.mxu0 0.0
    %1466 = vmatpush1.xpose.msra.mxu0 0.0
    %1467 = vmatprep.subr.mxu0 0.0
    %1468 = vmatpush1.xpose.msra.mxu0 0.0
    %1469 = vmatprep.subr.mxu0 0.0
    %1470 = vmatpush1.xpose.msra.mxu0 0.0
    %1471 = vmatprep.subr.mxu0 0.0
    %1472 = vmatpush1.xpose.msra.mxu0 0.0
    %1473 = vmatprep.subr.mxu0 0.0
    %1474 = vmatpush1.xpose.msra.mxu0 0.0
    %1475 = vmatprep.subr.mxu0 0.0
    %1476 = vmatpush1.xpose.msra.mxu0 0.0
    %1477 = vmatprep.subr.mxu0 0.0
    %1478 = vmatpush1.xpose.msra.mxu0 0.0
    %1479 = vmatprep.subr.mxu0 0.0
    %1480 = vmatpush1.xpose.msra.mxu0 0.0
    %1481 = vmatprep.subr.mxu0 0.0
    %1482 = vmatpush1.xpose.msra.mxu0 0.0
    %1483 = vmatprep.subr.mxu0 0.0
    %1484 = vmatpush1.xpose.msra.mxu0 0.0
    %1485 = vmatprep.subr.mxu0 0.0
    %1486 = vmatpush1.xpose.msra.mxu0 0.0
    %1487 = vmatprep.subr.mxu0 0.0
    %1488 = vmatpush1.xpose.msra.mxu0 0.0
    %1489 = vmatprep.subr.mxu0 0.0
    %1490 = vmatpush1.xpose.msra.mxu0 0.0
    %1491 = vmatprep.subr.mxu0 0.0
    %1492 = vmatpush1.xpose.msra.mxu0 0.0
    %1493 = vmatprep.subr.mxu0 0.0
    %1494 = vmatpush1.xpose.msra.mxu0 0.0
    %1495 = vmatprep.subr.mxu0 0.0
    %1496 = vmatpush1.xpose.msra.mxu0 0.0
    %1497 = vmatprep.subr.mxu0 0.0
    %1498 = vmatpush1.xpose.msra.mxu0 0.0
    %1499 = vmatprep.subr.mxu0 0.0
    %1500 = vmatpush1.xpose.msra.mxu0 0.0
    %1501 = vmatprep.subr.mxu0 0.0
    %1502 = vmatpush1.xpose.msra.mxu0 0.0
    %1503 = vmatprep.subr.mxu0 0.0
    %1504 = vmatpush1.xpose.msra.mxu0 0.0
    %1505 = vmatprep.subr.mxu0 0.0
    %1506 = vmatpush1.xpose.msra.mxu0 0.0
    %1507 = vmatprep.subr.mxu0 0.0
    %1508 = vmatpush1.xpose.msra.mxu0 0.0
    %1509 = vmatprep.subr.mxu0 0.0
    %1510 = vmatpush1.xpose.msra.mxu0 0.0
    %1511 = vmatprep.subr.mxu0 0.0
    %1512 = vmatpush1.xpose.msra.mxu0 0.0
    %1513 = vmatprep.subr.mxu0 0.0
    %1514 = vmatpush1.xpose.msra.mxu0 0.0
    %1515 = vmatprep.mubr.f32.mxu0 0.0
    %1516 = vmatmul.mubr.f32.gmra.mrb[0].mxu0 %v1446
    %v1517 = vpop.f32.mrb[0].mxu0
    %v1518 = vadd.f32 0.0, %v1517
    %v1519 = vpop.f32.mrb[0].mxu0
    %1520 = vdwg.mxu0
    %v1522 = vsel %vm1064, %v470, 0
    %v1525 = vsel %vm1064, %v766, 0
    %1527 = vmatprep.subr.mxu0 0.0
    %1528 = vmatpush1.xpose.msra.mxu0 %v1525
    %1529 = vmatprep.subr.mxu0 0.0
    %1530 = vmatpush1.xpose.msra.mxu0 0.0
    %1531 = vmatprep.subr.mxu0 0.0
    %1532 = vmatpush1.xpose.msra.mxu0 0.0
    %1533 = vmatprep.subr.mxu0 0.0
    %1534 = vmatpush1.xpose.msra.mxu0 0.0
    %1535 = vmatprep.subr.mxu0 0.0
    %1536 = vmatpush1.xpose.msra.mxu0 0.0
    %1537 = vmatprep.subr.mxu0 0.0
    %1538 = vmatpush1.xpose.msra.mxu0 0.0
    %1539 = vmatprep.subr.mxu0 0.0
    %1540 = vmatpush1.xpose.msra.mxu0 0.0
    %1541 = vmatprep.subr.mxu0 0.0
    %1542 = vmatpush1.xpose.msra.mxu0 0.0
    %1543 = vmatprep.subr.mxu0 0.0
    %1544 = vmatpush1.xpose.msra.mxu0 0.0
    %1545 = vmatprep.subr.mxu0 0.0
    %1546 = vmatpush1.xpose.msra.mxu0 0.0
    %1547 = vmatprep.subr.mxu0 0.0
    %1548 = vmatpush1.xpose.msra.mxu0 0.0
    %1549 = vmatprep.subr.mxu0 0.0
    %1550 = vmatpush1.xpose.msra.mxu0 0.0
    %1551 = vmatprep.subr.mxu0 0.0
    %1552 = vmatpush1.xpose.msra.mxu0 0.0
    %1553 = vmatprep.subr.mxu0 0.0
    %1554 = vmatpush1.xpose.msra.mxu0 0.0
    %1555 = vmatprep.subr.mxu0 0.0
    %1556 = vmatpush1.xpose.msra.mxu0 0.0
    %1557 = vmatprep.subr.mxu0 0.0
    %1558 = vmatpush1.xpose.msra.mxu0 0.0
    %1559 = vmatprep.subr.mxu0 0.0
    %1560 = vmatpush1.xpose.msra.mxu0 0.0
    %1561 = vmatprep.subr.mxu0 0.0
    %1562 = vmatpush1.xpose.msra.mxu0 0.0
    %1563 = vmatprep.subr.mxu0 0.0
    %1564 = vmatpush1.xpose.msra.mxu0 0.0
    %1565 = vmatprep.subr.mxu0 0.0
    %1566 = vmatpush1.xpose.msra.mxu0 0.0
    %1567 = vmatprep.subr.mxu0 0.0
    %1568 = vmatpush1.xpose.msra.mxu0 0.0
    %1569 = vmatprep.subr.mxu0 0.0
    %1570 = vmatpush1.xpose.msra.mxu0 0.0
    %1571 = vmatprep.subr.mxu0 0.0
    %1572 = vmatpush1.xpose.msra.mxu0 0.0
    %1573 = vmatprep.subr.mxu0 0.0
    %1574 = vmatpush1.xpose.msra.mxu0 0.0
    %1575 = vmatprep.subr.mxu0 0.0
    %1576 = vmatpush1.xpose.msra.mxu0 0.0
    %1577 = vmatprep.subr.mxu0 0.0
    %1578 = vmatpush1.xpose.msra.mxu0 0.0
    %1579 = vmatprep.subr.mxu0 0.0
    %1580 = vmatpush1.xpose.msra.mxu0 0.0
    %1581 = vmatprep.subr.mxu0 0.0
    %1582 = vmatpush1.xpose.msra.mxu0 0.0
    %1583 = vmatprep.subr.mxu0 0.0
    %1584 = vmatpush1.xpose.msra.mxu0 0.0
    %1585 = vmatprep.subr.mxu0 0.0
    %1586 = vmatpush1.xpose.msra.mxu0 0.0
    %1587 = vmatprep.subr.mxu0 0.0
    %1588 = vmatpush1.xpose.msra.mxu0 0.0
    %1589 = vmatprep.subr.mxu0 0.0
    %1590 = vmatpush1.xpose.msra.mxu0 0.0
    %1591 = vmatprep.mubr.f32.mxu0 0.0
    %1592 = vmatmul.mubr.f32.gmra.mrb[0].mxu0 %v1522
    %v1593 = vpop.f32.mrb[0].mxu0
    %v1594 = vadd.f32 0.0, %v1593
    %v1595 = vpop.f32.mrb[0].mxu0
    %1596 = vdwg.mxu0
    %v1598 = vsel %vm1064, %v471, 0
    %v1601 = vsel %vm1064, %v767, 0
    %1603 = vmatprep.subr.mxu0 0.0
    %1604 = vmatpush1.xpose.msra.mxu0 %v1601
    %1605 = vmatprep.subr.mxu0 0.0
    %1606 = vmatpush1.xpose.msra.mxu0 0.0
    %1607 = vmatprep.subr.mxu0 0.0
    %1608 = vmatpush1.xpose.msra.mxu0 0.0
    %1609 = vmatprep.subr.mxu0 0.0
    %1610 = vmatpush1.xpose.msra.mxu0 0.0
    %1611 = vmatprep.subr.mxu0 0.0
    %1612 = vmatpush1.xpose.msra.mxu0 0.0
    %1613 = vmatprep.subr.mxu0 0.0
    %1614 = vmatpush1.xpose.msra.mxu0 0.0
    %1615 = vmatprep.subr.mxu0 0.0
    %1616 = vmatpush1.xpose.msra.mxu0 0.0
    %1617 = vmatprep.subr.mxu0 0.0
    %1618 = vmatpush1.xpose.msra.mxu0 0.0
    %1619 = vmatprep.subr.mxu0 0.0
    %1620 = vmatpush1.xpose.msra.mxu0 0.0
    %1621 = vmatprep.subr.mxu0 0.0
    %1622 = vmatpush1.xpose.msra.mxu0 0.0
    %1623 = vmatprep.subr.mxu0 0.0
    %1624 = vmatpush1.xpose.msra.mxu0 0.0
    %1625 = vmatprep.subr.mxu0 0.0
    %1626 = vmatpush1.xpose.msra.mxu0 0.0
    %1627 = vmatprep.subr.mxu0 0.0
    %1628 = vmatpush1.xpose.msra.mxu0 0.0
    %1629 = vmatprep.subr.mxu0 0.0
    %1630 = vmatpush1.xpose.msra.mxu0 0.0
    %1631 = vmatprep.subr.mxu0 0.0
    %1632 = vmatpush1.xpose.msra.mxu0 0.0
    %1633 = vmatprep.subr.mxu0 0.0
    %1634 = vmatpush1.xpose.msra.mxu0 0.0
    %1635 = vmatprep.subr.mxu0 0.0
    %1636 = vmatpush1.xpose.msra.mxu0 0.0
    %1637 = vmatprep.subr.mxu0 0.0
    %1638 = vmatpush1.xpose.msra.mxu0 0.0
    %1639 = vmatprep.subr.mxu0 0.0
    %1640 = vmatpush1.xpose.msra.mxu0 0.0
    %1641 = vmatprep.subr.mxu0 0.0
    %1642 = vmatpush1.xpose.msra.mxu0 0.0
    %1643 = vmatprep.subr.mxu0 0.0
    %1644 = vmatpush1.xpose.msra.mxu0 0.0
    %1645 = vmatprep.subr.mxu0 0.0
    %1646 = vmatpush1.xpose.msra.mxu0 0.0
    %1647 = vmatprep.subr.mxu0 0.0
    %1648 = vmatpush1.xpose.msra.mxu0 0.0
    %1649 = vmatprep.subr.mxu0 0.0
    %1650 = vmatpush1.xpose.msra.mxu0 0.0
    %1651 = vmatprep.subr.mxu0 0.0
    %1652 = vmatpush1.xpose.msra.mxu0 0.0
    %1653 = vmatprep.subr.mxu0 0.0
    %1654 = vmatpush1.xpose.msra.mxu0 0.0
    %1655 = vmatprep.subr.mxu0 0.0
    %1656 = vmatpush1.xpose.msra.mxu0 0.0
    %1657 = vmatprep.subr.mxu0 0.0
    %1658 = vmatpush1.xpose.msra.mxu0 0.0
    %1659 = vmatprep.subr.mxu0 0.0
    %1660 = vmatpush1.xpose.msra.mxu0 0.0
    %1661 = vmatprep.subr.mxu0 0.0
    %1662 = vmatpush1.xpose.msra.mxu0 0.0
    %1663 = vmatprep.subr.mxu0 0.0
    %1664 = vmatpush1.xpose.msra.mxu0 0.0
    %1665 = vmatprep.subr.mxu0 0.0
    %1666 = vmatpush1.xpose.msra.mxu0 0.0
    %1667 = vmatprep.mubr.f32.mxu0 0.0
    %1668 = vmatmul.mubr.f32.gmra.mrb[0].mxu0 %v1598
    %v1669 = vpop.f32.mrb[0].mxu0
    %v1670 = vadd.f32 0.0, %v1669
    %v1671 = vpop.f32.mrb[0].mxu0
    %1672 = vdwg.mxu0
    %v1673 = vsel %vm1064, %v1138, -inf
    %1674 = vmax.xlane.f32.xlu0 %v1673
    %v1675 = vpop.xlane.xlu0 %1674
    %v1676 = vsel %vm1064, %v1214, -inf
    %1677 = vmax.xlane.f32.xlu0 %v1676
    %v1678 = vpop.xlane.xlu0 %1677
    %v1679 = vsel %vm1064, %v1290, -inf
    %1680 = vmax.xlane.f32.xlu0 %v1679
    %v1681 = vpop.xlane.xlu0 %1680
    %v1682 = vsel %vm1064, %v1366, -inf
    %1683 = vmax.xlane.f32.xlu0 %v1682
    %v1684 = vpop.xlane.xlu0 %1683
    %v1685 = vsel %vm1064, %v1442, -inf
    %1686 = vmax.xlane.f32.xlu0 %v1685
    %v1687 = vpop.xlane.xlu0 %1686
    %v1688 = vsel %vm1064, %v1518, -inf
    %1689 = vmax.xlane.f32.xlu0 %v1688
    %v1690 = vpop.xlane.xlu0 %1689
    %v1691 = vsel %vm1064, %v1594, -inf
    %1692 = vmax.xlane.f32.xlu0 %v1691
    %v1693 = vpop.xlane.xlu0 %1692
    %v1694 = vsel %vm1064, %v1670, -inf
    %1695 = vmax.xlane.f32.xlu0 %v1694
    %v1696 = vpop.xlane.xlu0 %1695
    %v1697 = vsub.f32 %v1138, %v1675
    %v1698 = vsub.f32 %v1214, %v1678
    %v1699 = vsub.f32 %v1290, %v1681
    %v1700 = vsub.f32 %v1366, %v1684
    %v1701 = vsub.f32 %v1442, %v1687
    %v1702 = vsub.f32 %v1518, %v1690
    %v1703 = vsub.f32 %v1594, %v1693
    %v1704 = vsub.f32 %v1670, %v1696
    %v1705 = vmul.f32 %v1697, 1.442695
    %v1706 = vpow.pop %v1705
    %v1707 = vmul.f32 %v1698, 1.442695
    %v1708 = vpow.pop %v1707
    %v1709 = vmul.f32 %v1699, 1.442695
    %v1710 = vpow.pop %v1709
    %v1711 = vmul.f32 %v1700, 1.442695
    %v1712 = vpow.pop %v1711
    %v1713 = vmul.f32 %v1701, 1.442695
    %v1714 = vpow.pop %v1713
    %v1715 = vmul.f32 %v1702, 1.442695
    %v1716 = vpow.pop %v1715
    %v1717 = vmul.f32 %v1703, 1.442695
    %v1718 = vpow.pop %v1717
    %v1719 = vmul.f32 %v1704, 1.442695
    %v1720 = vpow.pop %v1719
    %v1721 = vsel %vm1064, %v1706, 0.0
    %1722 = vadd.xlane.f32.xlu0 %v1721
    %v1723 = vpop.xlane.xlu0 %1722
    %v1724 = vsel %vm1064, %v1708, 0.0
    %1725 = vadd.xlane.f32.xlu0 %v1724
    %v1726 = vpop.xlane.xlu0 %1725
    %v1727 = vsel %vm1064, %v1710, 0.0
    %1728 = vadd.xlane.f32.xlu0 %v1727
    %v1729 = vpop.xlane.xlu0 %1728
    %v1730 = vsel %vm1064, %v1712, 0.0
    %1731 = vadd.xlane.f32.xlu0 %v1730
    %v1732 = vpop.xlane.xlu0 %1731
    %v1733 = vsel %vm1064, %v1714, 0.0
    %1734 = vadd.xlane.f32.xlu0 %v1733
    %v1735 = vpop.xlane.xlu0 %1734
    %v1736 = vsel %vm1064, %v1716, 0.0
    %1737 = vadd.xlane.f32.xlu0 %v1736
    %v1738 = vpop.xlane.xlu0 %1737
    %v1739 = vsel %vm1064, %v1718, 0.0
    %1740 = vadd.xlane.f32.xlu0 %v1739
    %v1741 = vpop.xlane.xlu0 %1740
    %v1742 = vsel %vm1064, %v1720, 0.0
    %1743 = vadd.xlane.f32.xlu0 %v1742
    %v1744 = vpop.xlane.xlu0 %1743
    %v1745 = vrcp.pop %v1723
    %v1746 = vrcp.pop %v1726
    %v1747 = vrcp.pop %v1729
    %v1748 = vrcp.pop %v1732
    %v1749 = vrcp.pop %v1735
    %v1750 = vrcp.pop %v1738
    %v1751 = vrcp.pop %v1741
    %v1752 = vrcp.pop %v1744
    %v1753 = vmul.f32 %v1706, %v1745
    %v1754 = vmul.f32 %v1708, %v1746
    %v1755 = vmul.f32 %v1710, %v1747
    %v1756 = vmul.f32 %v1712, %v1748
    %v1757 = vmul.f32 %v1714, %v1749
    %v1758 = vmul.f32 %v1716, %v1750
    %v1759 = vmul.f32 %v1718, %v1751
    %v1760 = vmul.f32 %v1720, %v1752
    %v1762 = vsel %vm1064, %v1753, 0
    %1764 = vmatprep.subr.mxu0 0.0
    %1765 = vmatpush1.msra.mxu0 %v992
    %1766 = vmatprep.subr.mxu0 0.0
    %1767 = vmatpush1.msra.mxu0 0.0
    %1768 = vmatprep.subr.mxu0 0.0
    %1769 = vmatpush1.msra.mxu0 0.0
    %1770 = vmatprep.subr.mxu0 0.0
    %1771 = vmatpush1.msra.mxu0 0.0
    %1772 = vmatprep.subr.mxu0 0.0
    %1773 = vmatpush1.msra.mxu0 0.0
    %1774 = vmatprep.subr.mxu0 0.0
    %1775 = vmatpush1.msra.mxu0 0.0
    %1776 = vmatprep.subr.mxu0 0.0
    %1777 = vmatpush1.msra.mxu0 0.0
    %1778 = vmatprep.subr.mxu0 0.0
    %1779 = vmatpush1.msra.mxu0 0.0
    %1780 = vmatprep.subr.mxu0 0.0
    %1781 = vmatpush1.msra.mxu0 0.0
    %1782 = vmatprep.subr.mxu0 0.0
    %1783 = vmatpush1.msra.mxu0 0.0
    %1784 = vmatprep.subr.mxu0 0.0
    %1785 = vmatpush1.msra.mxu0 0.0
    %1786 = vmatprep.subr.mxu0 0.0
    %1787 = vmatpush1.msra.mxu0 0.0
    %1788 = vmatprep.subr.mxu0 0.0
    %1789 = vmatpush1.msra.mxu0 0.0
    %1790 = vmatprep.subr.mxu0 0.0
    %1791 = vmatpush1.msra.mxu0 0.0
    %1792 = vmatprep.subr.mxu0 0.0
    %1793 = vmatpush1.msra.mxu0 0.0
    %1794 = vmatprep.subr.mxu0 0.0
    %1795 = vmatpush1.msra.mxu0 0.0
    %1796 = vmatprep.subr.mxu0 0.0
    %1797 = vmatpush1.msra.mxu0 0.0
    %1798 = vmatprep.subr.mxu0 0.0
    %1799 = vmatpush1.msra.mxu0 0.0
    %1800 = vmatprep.subr.mxu0 0.0
    %1801 = vmatpush1.msra.mxu0 0.0
    %1802 = vmatprep.subr.mxu0 0.0
    %1803 = vmatpush1.msra.mxu0 0.0
    %1804 = vmatprep.subr.mxu0 0.0
    %1805 = vmatpush1.msra.mxu0 0.0
    %1806 = vmatprep.subr.mxu0 0.0
    %1807 = vmatpush1.msra.mxu0 0.0
    %1808 = vmatprep.subr.mxu0 0.0
    %1809 = vmatpush1.msra.mxu0 0.0
    %1810 = vmatprep.subr.mxu0 0.0
    %1811 = vmatpush1.msra.mxu0 0.0
    %1812 = vmatprep.subr.mxu0 0.0
    %1813 = vmatpush1.msra.mxu0 0.0
    %1814 = vmatprep.subr.mxu0 0.0
    %1815 = vmatpush1.msra.mxu0 0.0
    %1816 = vmatprep.subr.mxu0 0.0
    %1817 = vmatpush1.msra.mxu0 0.0
    %1818 = vmatprep.subr.mxu0 0.0
    %1819 = vmatpush1.msra.mxu0 0.0
    %1820 = vmatprep.subr.mxu0 0.0
    %1821 = vmatpush1.msra.mxu0 0.0
    %1822 = vmatprep.subr.mxu0 0.0
    %1823 = vmatpush1.msra.mxu0 0.0
    %1824 = vmatprep.subr.mxu0 0.0
    %1825 = vmatpush1.msra.mxu0 0.0
    %1826 = vmatprep.subr.mxu0 0.0
    %1827 = vmatpush1.msra.mxu0 0.0
    %1828 = vmatprep.mubr.f32.mxu0 0.0
    %1829 = vmatmul.mubr.f32.gmra.mrb[0].mxu0 %v1762
    %v1830 = vpop.f32.mrb[0].mxu0
    %v1831 = vadd.f32 0.0, %v1830
    %v1832 = vpop.f32.mrb[0].mxu0
    %1833 = vdwg.mxu0
    %v1835 = vsel %vm1064, %v1754, 0
    %1837 = vmatprep.subr.mxu0 0.0
    %1838 = vmatpush1.msra.mxu0 %v993
    %1839 = vmatprep.subr.mxu0 0.0
    %1840 = vmatpush1.msra.mxu0 0.0
    %1841 = vmatprep.subr.mxu0 0.0
    %1842 = vmatpush1.msra.mxu0 0.0
    %1843 = vmatprep.subr.mxu0 0.0
    %1844 = vmatpush1.msra.mxu0 0.0
    %1845 = vmatprep.subr.mxu0 0.0
    %1846 = vmatpush1.msra.mxu0 0.0
    %1847 = vmatprep.subr.mxu0 0.0
    %1848 = vmatpush1.msra.mxu0 0.0
    %1849 = vmatprep.subr.mxu0 0.0
    %1850 = vmatpush1.msra.mxu0 0.0
    %1851 = vmatprep.subr.mxu0 0.0
    %1852 = vmatpush1.msra.mxu0 0.0
    %1853 = vmatprep.subr.mxu0 0.0
    %1854 = vmatpush1.msra.mxu0 0.0
    %1855 = vmatprep.subr.mxu0 0.0
    %1856 = vmatpush1.msra.mxu0 0.0
    %1857 = vmatprep.subr.mxu0 0.0
    %1858 = vmatpush1.msra.mxu0 0.0
    %1859 = vmatprep.subr.mxu0 0.0
    %1860 = vmatpush1.msra.mxu0 0.0
    %1861 = vmatprep.subr.mxu0 0.0
    %1862 = vmatpush1.msra.mxu0 0.0
    %1863 = vmatprep.subr.mxu0 0.0
    %1864 = vmatpush1.msra.mxu0 0.0
    %1865 = vmatprep.subr.mxu0 0.0
    %1866 = vmatpush1.msra.mxu0 0.0
    %1867 = vmatprep.subr.mxu0 0.0
    %1868 = vmatpush1.msra.mxu0 0.0
    %1869 = vmatprep.subr.mxu0 0.0
    %1870 = vmatpush1.msra.mxu0 0.0
    %1871 = vmatprep.subr.mxu0 0.0
    %1872 = vmatpush1.msra.mxu0 0.0
    %1873 = vmatprep.subr.mxu0 0.0
    %1874 = vmatpush1.msra.mxu0 0.0
    %1875 = vmatprep.subr.mxu0 0.0
    %1876 = vmatpush1.msra.mxu0 0.0
    %1877 = vmatprep.subr.mxu0 0.0
    %1878 = vmatpush1.msra.mxu0 0.0
    %1879 = vmatprep.subr.mxu0 0.0
    %1880 = vmatpush1.msra.mxu0 0.0
    %1881 = vmatprep.subr.mxu0 0.0
    %1882 = vmatpush1.msra.mxu0 0.0
    %1883 = vmatprep.subr.mxu0 0.0
    %1884 = vmatpush1.msra.mxu0 0.0
    %1885 = vmatprep.subr.mxu0 0.0
    %1886 = vmatpush1.msra.mxu0 0.0
    %1887 = vmatprep.subr.mxu0 0.0
    %1888 = vmatpush1.msra.mxu0 0.0
    %1889 = vmatprep.subr.mxu0 0.0
    %1890 = vmatpush1.msra.mxu0 0.0
    %1891 = vmatprep.subr.mxu0 0.0
    %1892 = vmatpush1.msra.mxu0 0.0
    %1893 = vmatprep.subr.mxu0 0.0
    %1894 = vmatpush1.msra.mxu0 0.0
    %1895 = vmatprep.subr.mxu0 0.0
    %1896 = vmatpush1.msra.mxu0 0.0
    %1897 = vmatprep.subr.mxu0 0.0
    %1898 = vmatpush1.msra.mxu0 0.0
    %1899 = vmatprep.subr.mxu0 0.0
    %1900 = vmatpush1.msra.mxu0 0.0
    %1901 = vmatprep.mubr.f32.mxu0 0.0
    %1902 = vmatmul.mubr.f32.gmra.mrb[0].mxu0 %v1835
    %v1903 = vpop.f32.mrb[0].mxu0
    %v1904 = vadd.f32 0.0, %v1903
    %v1905 = vpop.f32.mrb[0].mxu0
    %1906 = vdwg.mxu0
    %v1908 = vsel %vm1064, %v1755, 0
    %1910 = vmatprep.subr.mxu0 0.0
    %1911 = vmatpush1.msra.mxu0 %v994
    %1912 = vmatprep.subr.mxu0 0.0
    %1913 = vmatpush1.msra.mxu0 0.0
    %1914 = vmatprep.subr.mxu0 0.0
    %1915 = vmatpush1.msra.mxu0 0.0
    %1916 = vmatprep.subr.mxu0 0.0
    %1917 = vmatpush1.msra.mxu0 0.0
    %1918 = vmatprep.subr.mxu0 0.0
    %1919 = vmatpush1.msra.mxu0 0.0
    %1920 = vmatprep.subr.mxu0 0.0
    %1921 = vmatpush1.msra.mxu0 0.0
    %1922 = vmatprep.subr.mxu0 0.0
    %1923 = vmatpush1.msra.mxu0 0.0
    %1924 = vmatprep.subr.mxu0 0.0
    %1925 = vmatpush1.msra.mxu0 0.0
    %1926 = vmatprep.subr.mxu0 0.0
    %1927 = vmatpush1.msra.mxu0 0.0
    %1928 = vmatprep.subr.mxu0 0.0
    %1929 = vmatpush1.msra.mxu0 0.0
    %1930 = vmatprep.subr.mxu0 0.0
    %1931 = vmatpush1.msra.mxu0 0.0
    %1932 = vmatprep.subr.mxu0 0.0
    %1933 = vmatpush1.msra.mxu0 0.0
    %1934 = vmatprep.subr.mxu0 0.0
    %1935 = vmatpush1.msra.mxu0 0.0
    %1936 = vmatprep.subr.mxu0 0.0
    %1937 = vmatpush1.msra.mxu0 0.0
    %1938 = vmatprep.subr.mxu0 0.0
    %1939 = vmatpush1.msra.mxu0 0.0
    %1940 = vmatprep.subr.mxu0 0.0
    %1941 = vmatpush1.msra.mxu0 0.0
    %1942 = vmatprep.subr.mxu0 0.0
    %1943 = vmatpush1.msra.mxu0 0.0
    %1944 = vmatprep.subr.mxu0 0.0
    %1945 = vmatpush1.msra.mxu0 0.0
    %1946 = vmatprep.subr.mxu0 0.0
    %1947 = vmatpush1.msra.mxu0 0.0
    %1948 = vmatprep.subr.mxu0 0.0
    %1949 = vmatpush1.msra.mxu0 0.0
    %1950 = vmatprep.subr.mxu0 0.0
    %1951 = vmatpush1.msra.mxu0 0.0
    %1952 = vmatprep.subr.mxu0 0.0
    %1953 = vmatpush1.msra.mxu0 0.0
    %1954 = vmatprep.subr.mxu0 0.0
    %1955 = vmatpush1.msra.mxu0 0.0
    %1956 = vmatprep.subr.mxu0 0.0
    %1957 = vmatpush1.msra.mxu0 0.0
    %1958 = vmatprep.subr.mxu0 0.0
    %1959 = vmatpush1.msra.mxu0 0.0
    %1960 = vmatprep.subr.mxu0 0.0
    %1961 = vmatpush1.msra.mxu0 0.0
    %1962 = vmatprep.subr.mxu0 0.0
    %1963 = vmatpush1.msra.mxu0 0.0
    %1964 = vmatprep.subr.mxu0 0.0
    %1965 = vmatpush1.msra.mxu0 0.0
    %1966 = vmatprep.subr.mxu0 0.0
    %1967 = vmatpush1.msra.mxu0 0.0
    %1968 = vmatprep.subr.mxu0 0.0
    %1969 = vmatpush1.msra.mxu0 0.0
    %1970 = vmatprep.subr.mxu0 0.0
    %1971 = vmatpush1.msra.mxu0 0.0
    %1972 = vmatprep.subr.mxu0 0.0
    %1973 = vmatpush1.msra.mxu0 0.0
    %1974 = vmatprep.mubr.f32.mxu0 0.0
    %1975 = vmatmul.mubr.f32.gmra.mrb[0].mxu0 %v1908
    %v1976 = vpop.f32.mrb[0].mxu0
    %v1977 = vadd.f32 0.0, %v1976
    %v1978 = vpop.f32.mrb[0].mxu0
    %1979 = vdwg.mxu0
    %v1981 = vsel %vm1064, %v1756, 0
    %1983 = vmatprep.subr.mxu0 0.0
    %1984 = vmatpush1.msra.mxu0 %v995
    %1985 = vmatprep.subr.mxu0 0.0
    %1986 = vmatpush1.msra.mxu0 0.0
    %1987 = vmatprep.subr.mxu0 0.0
    %1988 = vmatpush1.msra.mxu0 0.0
    %1989 = vmatprep.subr.mxu0 0.0
    %1990 = vmatpush1.msra.mxu0 0.0
    %1991 = vmatprep.subr.mxu0 0.0
    %1992 = vmatpush1.msra.mxu0 0.0
    %1993 = vmatprep.subr.mxu0 0.0
    %1994 = vmatpush1.msra.mxu0 0.0
    %1995 = vmatprep.subr.mxu0 0.0
    %1996 = vmatpush1.msra.mxu0 0.0
    %1997 = vmatprep.subr.mxu0 0.0
    %1998 = vmatpush1.msra.mxu0 0.0
    %1999 = vmatprep.subr.mxu0 0.0
    %2000 = vmatpush1.msra.mxu0 0.0
    %2001 = vmatprep.subr.mxu0 0.0
    %2002 = vmatpush1.msra.mxu0 0.0
    %2003 = vmatprep.subr.mxu0 0.0
    %2004 = vmatpush1.msra.mxu0 0.0
    %2005 = vmatprep.subr.mxu0 0.0
    %2006 = vmatpush1.msra.mxu0 0.0
    %2007 = vmatprep.subr.mxu0 0.0
    %2008 = vmatpush1.msra.mxu0 0.0
    %2009 = vmatprep.subr.mxu0 0.0
    %2010 = vmatpush1.msra.mxu0 0.0
    %2011 = vmatprep.subr.mxu0 0.0
    %2012 = vmatpush1.msra.mxu0 0.0
    %2013 = vmatprep.subr.mxu0 0.0
    %2014 = vmatpush1.msra.mxu0 0.0
    %2015 = vmatprep.subr.mxu0 0.0
    %2016 = vmatpush1.msra.mxu0 0.0
    %2017 = vmatprep.subr.mxu0 0.0
    %2018 = vmatpush1.msra.mxu0 0.0
    %2019 = vmatprep.subr.mxu0 0.0
    %2020 = vmatpush1.msra.mxu0 0.0
    %2021 = vmatprep.subr.mxu0 0.0
    %2022 = vmatpush1.msra.mxu0 0.0
    %2023 = vmatprep.subr.mxu0 0.0
    %2024 = vmatpush1.msra.mxu0 0.0
    %2025 = vmatprep.subr.mxu0 0.0
    %2026 = vmatpush1.msra.mxu0 0.0
    %2027 = vmatprep.subr.mxu0 0.0
    %2028 = vmatpush1.msra.mxu0 0.0
    %2029 = vmatprep.subr.mxu0 0.0
    %2030 = vmatpush1.msra.mxu0 0.0
    %2031 = vmatprep.subr.mxu0 0.0
    %2032 = vmatpush1.msra.mxu0 0.0
    %2033 = vmatprep.subr.mxu0 0.0
    %2034 = vmatpush1.msra.mxu0 0.0
    %2035 = vmatprep.subr.mxu0 0.0
    %2036 = vmatpush1.msra.mxu0 0.0
    %2037 = vmatprep.subr.mxu0 0.0
    %2038 = vmatpush1.msra.mxu0 0.0
    %2039 = vmatprep.subr.mxu0 0.0
    %2040 = vmatpush1.msra.mxu0 0.0
    %2041 = vmatprep.subr.mxu0 0.0
    %2042 = vmatpush1.msra.mxu0 0.0
    %2043 = vmatprep.subr.mxu0 0.0
    %2044 = vmatpush1.msra.mxu0 0.0
    %2045 = vmatprep.subr.mxu0 0.0
    %2046 = vmatpush1.msra.mxu0 0.0
    %2047 = vmatprep.mubr.f32.mxu0 0.0
    %2048 = vmatmul.mubr.f32.gmra.mrb[0].mxu0 %v1981
    %v2049 = vpop.f32.mrb[0].mxu0
    %v2050 = vadd.f32 0.0, %v2049
    %v2051 = vpop.f32.mrb[0].mxu0
    %2052 = vdwg.mxu0
    %v2054 = vsel %vm1064, %v1757, 0
    %2056 = vmatprep.subr.mxu0 0.0
    %2057 = vmatpush1.msra.mxu0 %v1060
    %2058 = vmatprep.subr.mxu0 0.0
    %2059 = vmatpush1.msra.mxu0 0.0
    %2060 = vmatprep.subr.mxu0 0.0
    %2061 = vmatpush1.msra.mxu0 0.0
    %2062 = vmatprep.subr.mxu0 0.0
    %2063 = vmatpush1.msra.mxu0 0.0
    %2064 = vmatprep.subr.mxu0 0.0
    %2065 = vmatpush1.msra.mxu0 0.0
    %2066 = vmatprep.subr.mxu0 0.0
    %2067 = vmatpush1.msra.mxu0 0.0
    %2068 = vmatprep.subr.mxu0 0.0
    %2069 = vmatpush1.msra.mxu0 0.0
    %2070 = vmatprep.subr.mxu0 0.0
    %2071 = vmatpush1.msra.mxu0 0.0
    %2072 = vmatprep.subr.mxu0 0.0
    %2073 = vmatpush1.msra.mxu0 0.0
    %2074 = vmatprep.subr.mxu0 0.0
    %2075 = vmatpush1.msra.mxu0 0.0
    %2076 = vmatprep.subr.mxu0 0.0
    %2077 = vmatpush1.msra.mxu0 0.0
    %2078 = vmatprep.subr.mxu0 0.0
    %2079 = vmatpush1.msra.mxu0 0.0
    %2080 = vmatprep.subr.mxu0 0.0
    %2081 = vmatpush1.msra.mxu0 0.0
    %2082 = vmatprep.subr.mxu0 0.0
    %2083 = vmatpush1.msra.mxu0 0.0
    %2084 = vmatprep.subr.mxu0 0.0
    %2085 = vmatpush1.msra.mxu0 0.0
    %2086 = vmatprep.subr.mxu0 0.0
    %2087 = vmatpush1.msra.mxu0 0.0
    %2088 = vmatprep.subr.mxu0 0.0
    %2089 = vmatpush1.msra.mxu0 0.0
    %2090 = vmatprep.subr.mxu0 0.0
    %2091 = vmatpush1.msra.mxu0 0.0
    %2092 = vmatprep.subr.mxu0 0.0
    %2093 = vmatpush1.msra.mxu0 0.0
    %2094 = vmatprep.subr.mxu0 0.0
    %2095 = vmatpush1.msra.mxu0 0.0
    %2096 = vmatprep.subr.mxu0 0.0
    %2097 = vmatpush1.msra.mxu0 0.0
    %2098 = vmatprep.subr.mxu0 0.0
    %2099 = vmatpush1.msra.mxu0 0.0
    %2100 = vmatprep.subr.mxu0 0.0
    %2101 = vmatpush1.msra.mxu0 0.0
    %2102 = vmatprep.subr.mxu0 0.0
    %2103 = vmatpush1.msra.mxu0 0.0
    %2104 = vmatprep.subr.mxu0 0.0
    %2105 = vmatpush1.msra.mxu0 0.0
    %2106 = vmatprep.subr.mxu0 0.0
    %2107 = vmatpush1.msra.mxu0 0.0
    %2108 = vmatprep.subr.mxu0 0.0
    %2109 = vmatpush1.msra.mxu0 0.0
    %2110 = vmatprep.subr.mxu0 0.0
    %2111 = vmatpush1.msra.mxu0 0.0
    %2112 = vmatprep.subr.mxu0 0.0
    %2113 = vmatpush1.msra.mxu0 0.0
    %2114 = vmatprep.subr.mxu0 0.0
    %2115 = vmatpush1.msra.mxu0 0.0
    %2116 = vmatprep.subr.mxu0 0.0
    %2117 = vmatpush1.msra.mxu0 0.0
    %2118 = vmatprep.subr.mxu0 0.0
    %2119 = vmatpush1.msra.mxu0 0.0
    %2120 = vmatprep.mubr.f32.mxu0 0.0
    %2121 = vmatmul.mubr.f32.gmra.mrb[0].mxu0 %v2054
    %v2122 = vpop.f32.mrb[0].mxu0
    %v2123 = vadd.f32 0.0, %v2122
    %v2124 = vpop.f32.mrb[0].mxu0
    %2125 = vdwg.mxu0
    %v2127 = vsel %vm1064, %v1758, 0
    %2129 = vmatprep.subr.mxu0 0.0
    %2130 = vmatpush1.msra.mxu0 %v1061
    %2131 = vmatprep.subr.mxu0 0.0
    %2132 = vmatpush1.msra.mxu0 0.0
    %2133 = vmatprep.subr.mxu0 0.0
    %2134 = vmatpush1.msra.mxu0 0.0
    %2135 = vmatprep.subr.mxu0 0.0
    %2136 = vmatpush1.msra.mxu0 0.0
    %2137 = vmatprep.subr.mxu0 0.0
    %2138 = vmatpush1.msra.mxu0 0.0
    %2139 = vmatprep.subr.mxu0 0.0
    %2140 = vmatpush1.msra.mxu0 0.0
    %2141 = vmatprep.subr.mxu0 0.0
    %2142 = vmatpush1.msra.mxu0 0.0
    %2143 = vmatprep.subr.mxu0 0.0
    %2144 = vmatpush1.msra.mxu0 0.0
    %2145 = vmatprep.subr.mxu0 0.0
    %2146 = vmatpush1.msra.mxu0 0.0
    %2147 = vmatprep.subr.mxu0 0.0
    %2148 = vmatpush1.msra.mxu0 0.0
    %2149 = vmatprep.subr.mxu0 0.0
    %2150 = vmatpush1.msra.mxu0 0.0
    %2151 = vmatprep.subr.mxu0 0.0
    %2152 = vmatpush1.msra.mxu0 0.0
    %2153 = vmatprep.subr.mxu0 0.0
    %2154 = vmatpush1.msra.mxu0 0.0
    %2155 = vmatprep.subr.mxu0 0.0
    %2156 = vmatpush1.msra.mxu0 0.0
    %2157 = vmatprep.subr.mxu0 0.0
    %2158 = vmatpush1.msra.mxu0 0.0
    %2159 = vmatprep.subr.mxu0 0.0
    %2160 = vmatpush1.msra.mxu0 0.0
    %2161 = vmatprep.subr.mxu0 0.0
    %2162 = vmatpush1.msra.mxu0 0.0
    %2163 = vmatprep.subr.mxu0 0.0
    %2164 = vmatpush1.msra.mxu0 0.0
    %2165 = vmatprep.subr.mxu0 0.0
    %2166 = vmatpush1.msra.mxu0 0.0
    %2167 = vmatprep.subr.mxu0 0.0
    %2168 = vmatpush1.msra.mxu0 0.0
    %2169 = vmatprep.subr.mxu0 0.0
    %2170 = vmatpush1.msra.mxu0 0.0
    %2171 = vmatprep.subr.mxu0 0.0
    %2172 = vmatpush1.msra.mxu0 0.0
    %2173 = vmatprep.subr.mxu0 0.0
    %2174 = vmatpush1.msra.mxu0 0.0
    %2175 = vmatprep.subr.mxu0 0.0
    %2176 = vmatpush1.msra.mxu0 0.0
    %2177 = vmatprep.subr.mxu0 0.0
    %2178 = vmatpush1.msra.mxu0 0.0
    %2179 = vmatprep.subr.mxu0 0.0
    %2180 = vmatpush1.msra.mxu0 0.0
    %2181 = vmatprep.subr.mxu0 0.0
    %2182 = vmatpush1.msra.mxu0 0.0
    %2183 = vmatprep.subr.mxu0 0.0
    %2184 = vmatpush1.msra.mxu0 0.0
    %2185 = vmatprep.subr.mxu0 0.0
    %2186 = vmatpush1.msra.mxu0 0.0
    %2187 = vmatprep.subr.mxu0 0.0
    %2188 = vmatpush1.msra.mxu0 0.0
    %2189 = vmatprep.subr.mxu0 0.0
    %2190 = vmatpush1.msra.mxu0 0.0
    %2191 = vmatprep.subr.mxu0 0.0
    %2192 = vmatpush1.msra.mxu0 0.0
    %2193 = vmatprep.mubr.f32.mxu0 0.0
    %2194 = vmatmul.mubr.f32.gmra.mrb[0].mxu0 %v2127
    %v2195 = vpop.f32.mrb[0].mxu0
    %v2196 = vadd.f32 0.0, %v2195
    %v2197 = vpop.f32.mrb[0].mxu0
    %2198 = vdwg.mxu0
    %v2200 = vsel %vm1064, %v1759, 0
    %2202 = vmatprep.subr.mxu0 0.0
    %2203 = vmatpush1.msra.mxu0 %v1062
    %2204 = vmatprep.subr.mxu0 0.0
    %2205 = vmatpush1.msra.mxu0 0.0
    %2206 = vmatprep.subr.mxu0 0.0
    %2207 = vmatpush1.msra.mxu0 0.0
    %2208 = vmatprep.subr.mxu0 0.0
    %2209 = vmatpush1.msra.mxu0 0.0
    %2210 = vmatprep.subr.mxu0 0.0
    %2211 = vmatpush1.msra.mxu0 0.0
    %2212 = vmatprep.subr.mxu0 0.0
    %2213 = vmatpush1.msra.mxu0 0.0
    %2214 = vmatprep.subr.mxu0 0.0
    %2215 = vmatpush1.msra.mxu0 0.0
    %2216 = vmatprep.subr.mxu0 0.0
    %2217 = vmatpush1.msra.mxu0 0.0
    %2218 = vmatprep.subr.mxu0 0.0
    %2219 = vmatpush1.msra.mxu0 0.0
    %2220 = vmatprep.subr.mxu0 0.0
    %2221 = vmatpush1.msra.mxu0 0.0
    %2222 = vmatprep.subr.mxu0 0.0
    %2223 = vmatpush1.msra.mxu0 0.0
    %2224 = vmatprep.subr.mxu0 0.0
    %2225 = vmatpush1.msra.mxu0 0.0
    %2226 = vmatprep.subr.mxu0 0.0
    %2227 = vmatpush1.msra.mxu0 0.0
    %2228 = vmatprep.subr.mxu0 0.0
    %2229 = vmatpush1.msra.mxu0 0.0
    %2230 = vmatprep.subr.mxu0 0.0
    %2231 = vmatpush1.msra.mxu0 0.0
    %2232 = vmatprep.subr.mxu0 0.0
    %2233 = vmatpush1.msra.mxu0 0.0
    %2234 = vmatprep.subr.mxu0 0.0
    %2235 = vmatpush1.msra.mxu0 0.0
    %2236 = vmatprep.subr.mxu0 0.0
    %2237 = vmatpush1.msra.mxu0 0.0
    %2238 = vmatprep.subr.mxu0 0.0
    %2239 = vmatpush1.msra.mxu0 0.0
    %2240 = vmatprep.subr.mxu0 0.0
    %2241 = vmatpush1.msra.mxu0 0.0
    %2242 = vmatprep.subr.mxu0 0.0
    %2243 = vmatpush1.msra.mxu0 0.0
    %2244 = vmatprep.subr.mxu0 0.0
    %2245 = vmatpush1.msra.mxu0 0.0
    %2246 = vmatprep.subr.mxu0 0.0
    %2247 = vmatpush1.msra.mxu0 0.0
    %2248 = vmatprep.subr.mxu0 0.0
    %2249 = vmatpush1.msra.mxu0 0.0
    %2250 = vmatprep.subr.mxu0 0.0
    %2251 = vmatpush1.msra.mxu0 0.0
    %2252 = vmatprep.subr.mxu0 0.0
    %2253 = vmatpush1.msra.mxu0 0.0
    %2254 = vmatprep.subr.mxu0 0.0
    %2255 = vmatpush1.msra.mxu0 0.0
    %2256 = vmatprep.subr.mxu0 0.0
    %2257 = vmatpush1.msra.mxu0 0.0
    %2258 = vmatprep.subr.mxu0 0.0
    %2259 = vmatpush1.msra.mxu0 0.0
    %2260 = vmatprep.subr.mxu0 0.0
    %2261 = vmatpush1.msra.mxu0 0.0
    %2262 = vmatprep.subr.mxu0 0.0
    %2263 = vmatpush1.msra.mxu0 0.0
    %2264 = vmatprep.subr.mxu0 0.0
    %2265 = vmatpush1.msra.mxu0 0.0
    %2266 = vmatprep.mubr.f32.mxu0 0.0
    %2267 = vmatmul.mubr.f32.gmra.mrb[0].mxu0 %v2200
    %v2268 = vpop.f32.mrb[0].mxu0
    %v2269 = vadd.f32 0.0, %v2268
    %v2270 = vpop.f32.mrb[0].mxu0
    %2271 = vdwg.mxu0
    %v2273 = vsel %vm1064, %v1760, 0
    %2275 = vmatprep.subr.mxu0 0.0
    %2276 = vmatpush1.msra.mxu0 %v1063
    %2277 = vmatprep.subr.mxu0 0.0
    %2278 = vmatpush1.msra.mxu0 0.0
    %2279 = vmatprep.subr.mxu0 0.0
    %2280 = vmatpush1.msra.mxu0 0.0
    %2281 = vmatprep.subr.mxu0 0.0
    %2282 = vmatpush1.msra.mxu0 0.0
    %2283 = vmatprep.subr.mxu0 0.0
    %2284 = vmatpush1.msra.mxu0 0.0
    %2285 = vmatprep.subr.mxu0 0.0
    %2286 = vmatpush1.msra.mxu0 0.0
    %2287 = vmatprep.subr.mxu0 0.0
    %2288 = vmatpush1.msra.mxu0 0.0
    %2289 = vmatprep.subr.mxu0 0.0
    %2290 = vmatpush1.msra.mxu0 0.0
    %2291 = vmatprep.subr.mxu0 0.0
    %2292 = vmatpush1.msra.mxu0 0.0
    %2293 = vmatprep.subr.mxu0 0.0
    %2294 = vmatpush1.msra.mxu0 0.0
    %2295 = vmatprep.subr.mxu0 0.0
    %2296 = vmatpush1.msra.mxu0 0.0
    %2297 = vmatprep.subr.mxu0 0.0
    %2298 = vmatpush1.msra.mxu0 0.0
    %2299 = vmatprep.subr.mxu0 0.0
    %2300 = vmatpush1.msra.mxu0 0.0
    %2301 = vmatprep.subr.mxu0 0.0
    %2302 = vmatpush1.msra.mxu0 0.0
    %2303 = vmatprep.subr.mxu0 0.0
    %2304 = vmatpush1.msra.mxu0 0.0
    %2305 = vmatprep.subr.mxu0 0.0
    %2306 = vmatpush1.msra.mxu0 0.0
    %2307 = vmatprep.subr.mxu0 0.0
    %2308 = vmatpush1.msra.mxu0 0.0
    %2309 = vmatprep.subr.mxu0 0.0
    %2310 = vmatpush1.msra.mxu0 0.0
    %2311 = vmatprep.subr.mxu0 0.0
    %2312 = vmatpush1.msra.mxu0 0.0
    %2313 = vmatprep.subr.mxu0 0.0
    %2314 = vmatpush1.msra.mxu0 0.0
    %2315 = vmatprep.subr.mxu0 0.0
    %2316 = vmatpush1.msra.mxu0 0.0
    %2317 = vmatprep.subr.mxu0 0.0
    %2318 = vmatpush1.msra.mxu0 0.0
    %2319 = vmatprep.subr.mxu0 0.0
    %2320 = vmatpush1.msra.mxu0 0.0
    %2321 = vmatprep.subr.mxu0 0.0
    %2322 = vmatpush1.msra.mxu0 0.0
    %2323 = vmatprep.subr.mxu0 0.0
    %2324 = vmatpush1.msra.mxu0 0.0
    %2325 = vmatprep.subr.mxu0 0.0
    %2326 = vmatpush1.msra.mxu0 0.0
    %2327 = vmatprep.subr.mxu0 0.0
    %2328 = vmatpush1.msra.mxu0 0.0
    %2329 = vmatprep.subr.mxu0 0.0
    %2330 = vmatpush1.msra.mxu0 0.0
    %2331 = vmatprep.subr.mxu0 0.0
    %2332 = vmatpush1.msra.mxu0 0.0
    %2333 = vmatprep.subr.mxu0 0.0
    %2334 = vmatpush1.msra.mxu0 0.0
    %2335 = vmatprep.subr.mxu0 0.0
    %2336 = vmatpush1.msra.mxu0 0.0
    %2337 = vmatprep.subr.mxu0 0.0
    %2338 = vmatpush1.msra.mxu0 0.0
    %2339 = vmatprep.mubr.f32.mxu0 0.0
    %2340 = vmatmul.mubr.f32.gmra.mrb[0].mxu0 %v2273
    %v2341 = vpop.f32.mrb[0].mxu0
    %v2342 = vadd.f32 0.0, %v2341
    %v2343 = vpop.f32.mrb[0].mxu0
    %2344 = vdwg.mxu0
    %v2345 = vcombine.low %v1831, %v1977
    %v2346 = vcombine.high %v1831, %v1977
    %v2348 = vunpack.c.l.s4 1983009808
    %v2349 = vunpack.c.0.s8 %v2348
    %v2350 = vlaneseq
    %v2351 = vshrl.u32 %v2350, 7
    %v2352 = vsub.s32 %v2349, %v2351
    %v2353 = vrot.slane %v2345, %v2352
    %v2355 = vunpack.c.l.s4 1983009808
    %v2356 = vunpack.c.0.s8 %v2355
    %v2357 = vlaneseq
    %v2358 = vshrl.u32 %v2357, 7
    %v2359 = vsub.s32 %v2356, %v2358
    %v2360 = vrot.slane %v2346, %v2359
    %v2361 = vcombine.low %v1904, %v2050
    %v2362 = vcombine.high %v1904, %v2050
    %v2364 = vunpack.c.l.s4 1983009808
    %v2365 = vunpack.c.0.s8 %v2364
    %v2366 = vlaneseq
    %v2367 = vshrl.u32 %v2366, 7
    %v2368 = vsub.s32 %v2365, %v2367
    %v2369 = vrot.slane %v2361, %v2368
    %v2371 = vunpack.c.l.s4 1983009808
    %v2372 = vunpack.c.0.s8 %v2371
    %v2373 = vlaneseq
    %v2374 = vshrl.u32 %v2373, 7
    %v2375 = vsub.s32 %v2372, %v2374
    %v2376 = vrot.slane %v2362, %v2375
    %v2377 = vcombine.low %v2353, %v2369
    %v2378 = vcombine.high %v2353, %v2369
    %v2380 = vunpack.c.l.s4 1934713408
    %v2381 = vunpack.c.0.s8 %v2380
    %v2382 = vlaneseq
    %v2383 = vshrl.u32 %v2382, 7
    %v2384 = vsub.s32 %v2381, %v2383
    %v2385 = vrot.slane %v2377, %v2384
    %v2387 = vunpack.c.l.s4 1934713408
    %v2388 = vunpack.c.0.s8 %v2387
    %v2389 = vlaneseq
    %v2390 = vshrl.u32 %v2389, 7
    %v2391 = vsub.s32 %v2388, %v2390
    %v2392 = vrot.slane %v2378, %v2391
    %v2393 = vcombine.low %v2360, %v2376
    %v2394 = vcombine.high %v2360, %v2376
    %v2396 = vunpack.c.l.s4 1934713408
    %v2397 = vunpack.c.0.s8 %v2396
    %v2398 = vlaneseq
    %v2399 = vshrl.u32 %v2398, 7
    %v2400 = vsub.s32 %v2397, %v2399
    %v2401 = vrot.slane %v2393, %v2400
    %v2403 = vunpack.c.l.s4 1934713408
    %v2404 = vunpack.c.0.s8 %v2403
    %v2405 = vlaneseq
    %v2406 = vshrl.u32 %v2405, 7
    %v2407 = vsub.s32 %v2404, %v2406
    %v2408 = vrot.slane %v2394, %v2407
    %v2409 = vcombine.high %v2385, 0.0
    %v2410 = vcombine.high %v2392, 0.0
    %v2411 = vcombine.high %v2401, 0.0
    %v2412 = vcombine.high %v2408, 0.0
    %v2413 = vcombine.low %v2123, %v2269
    %v2414 = vcombine.high %v2123, %v2269
    %v2416 = vunpack.c.l.s4 1983009808
    %v2417 = vunpack.c.0.s8 %v2416
    %v2418 = vlaneseq
    %v2419 = vshrl.u32 %v2418, 7
    %v2420 = vsub.s32 %v2417, %v2419
    %v2421 = vrot.slane %v2413, %v2420
    %v2423 = vunpack.c.l.s4 1983009808
    %v2424 = vunpack.c.0.s8 %v2423
    %v2425 = vlaneseq
    %v2426 = vshrl.u32 %v2425, 7
    %v2427 = vsub.s32 %v2424, %v2426
    %v2428 = vrot.slane %v2414, %v2427
    %v2429 = vcombine.low %v2196, %v2342
    %v2430 = vcombine.high %v2196, %v2342
    %v2432 = vunpack.c.l.s4 1983009808
    %v2433 = vunpack.c.0.s8 %v2432
    %v2434 = vlaneseq
    %v2435 = vshrl.u32 %v2434, 7
    %v2436 = vsub.s32 %v2433, %v2435
    %v2437 = vrot.slane %v2429, %v2436
    %v2439 = vunpack.c.l.s4 1983009808
    %v2440 = vunpack.c.0.s8 %v2439
    %v2441 = vlaneseq
    %v2442 = vshrl.u32 %v2441, 7
    %v2443 = vsub.s32 %v2440, %v2442
    %v2444 = vrot.slane %v2430, %v2443
    %v2445 = vcombine.low %v2421, %v2437
    %v2446 = vcombine.high %v2421, %v2437
    %v2448 = vunpack.c.l.s4 1934713408
    %v2449 = vunpack.c.0.s8 %v2448
    %v2450 = vlaneseq
    %v2451 = vshrl.u32 %v2450, 7
    %v2452 = vsub.s32 %v2449, %v2451
    %v2453 = vrot.slane %v2445, %v2452
    %v2455 = vunpack.c.l.s4 1934713408
    %v2456 = vunpack.c.0.s8 %v2455
    %v2457 = vlaneseq
    %v2458 = vshrl.u32 %v2457, 7
    %v2459 = vsub.s32 %v2456, %v2458
    %v2460 = vrot.slane %v2446, %v2459
    %v2461 = vcombine.low %v2428, %v2444
    %v2462 = vcombine.high %v2428, %v2444
    %v2464 = vunpack.c.l.s4 1934713408
    %v2465 = vunpack.c.0.s8 %v2464
    %v2466 = vlaneseq
    %v2467 = vshrl.u32 %v2466, 7
    %v2468 = vsub.s32 %v2465, %v2467
    %v2469 = vrot.slane %v2461, %v2468
    %v2471 = vunpack.c.l.s4 1934713408
    %v2472 = vunpack.c.0.s8 %v2471
    %v2473 = vlaneseq
    %v2474 = vshrl.u32 %v2473, 7
    %v2475 = vsub.s32 %v2472, %v2474
    %v2476 = vrot.slane %v2462, %v2475
    %v2477 = vcombine.high %v2453, 0.0
    %v2478 = vcombine.high %v2460, 0.0
    %v2479 = vcombine.high %v2469, 0.0
    %v2480 = vcombine.high %v2476, 0.0
    %v2481 = vcombine.low %v2385, %v2392
    %v2483 = vunpack.c.l.s4 1983009808
    %v2484 = vunpack.c.0.s8 %v2483
    %v2485 = vlaneseq
    %v2486 = vshrl.u32 %v2485, 7
    %v2487 = vsub.s32 %v2484, %v2486
    %v2488 = vrot.slane %v2481, %v2487
    %v2489 = vcombine.low %v2409, %v2410
    %v2491 = vunpack.c.l.s4 1983009808
    %v2492 = vunpack.c.0.s8 %v2491
    %v2493 = vlaneseq
    %v2494 = vshrl.u32 %v2493, 7
    %v2495 = vsub.s32 %v2492, %v2494
    %v2496 = vrot.slane %v2489, %v2495
    %v2497 = vcombine.low %v2401, %v2408
    %v2499 = vunpack.c.l.s4 1983009808
    %v2500 = vunpack.c.0.s8 %v2499
    %v2501 = vlaneseq
    %v2502 = vshrl.u32 %v2501, 7
    %v2503 = vsub.s32 %v2500, %v2502
    %v2504 = vrot.slane %v2497, %v2503
    %v2505 = vcombine.low %v2411, %v2412
    %v2507 = vunpack.c.l.s4 1983009808
    %v2508 = vunpack.c.0.s8 %v2507
    %v2509 = vlaneseq
    %v2510 = vshrl.u32 %v2509, 7
    %v2511 = vsub.s32 %v2508, %v2510
    %v2512 = vrot.slane %v2505, %v2511
    %v2513 = vcombine.low %v2488, %v2496
    %v2514 = vcombine.high %v2488, %v2496
    %v2516 = vunpack.c.l.s4 1934713408
    %v2517 = vunpack.c.0.s8 %v2516
    %v2518 = vlaneseq
    %v2519 = vshrl.u32 %v2518, 7
    %v2520 = vsub.s32 %v2517, %v2519
    %v2521 = vrot.slane %v2513, %v2520
    %v2523 = vunpack.c.l.s4 1934713408
    %v2524 = vunpack.c.0.s8 %v2523
    %v2525 = vlaneseq
    %v2526 = vshrl.u32 %v2525, 7
    %v2527 = vsub.s32 %v2524, %v2526
    %v2528 = vrot.slane %v2514, %v2527
    %v2529 = vcombine.low %v2504, %v2512
    %v2530 = vcombine.high %v2504, %v2512
    %v2532 = vunpack.c.l.s4 1934713408
    %v2533 = vunpack.c.0.s8 %v2532
    %v2534 = vlaneseq
    %v2535 = vshrl.u32 %v2534, 7
    %v2536 = vsub.s32 %v2533, %v2535
    %v2537 = vrot.slane %v2529, %v2536
    %v2539 = vunpack.c.l.s4 1934713408
    %v2540 = vunpack.c.0.s8 %v2539
    %v2541 = vlaneseq
    %v2542 = vshrl.u32 %v2541, 7
    %v2543 = vsub.s32 %v2540, %v2542
    %v2544 = vrot.slane %v2530, %v2543
    %v2545 = vcombine.low %v2521, %v2537
    %v2546 = vcombine.high %v2521, %v2537
    %v2547 = vcombine.low %v2528, %v2544
    %v2548 = vcombine.high %v2528, %v2544
    %v2549 = vcombine.low %v2453, %v2460
    %v2551 = vunpack.c.l.s4 1983009808
    %v2552 = vunpack.c.0.s8 %v2551
    %v2553 = vlaneseq
    %v2554 = vshrl.u32 %v2553, 7
    %v2555 = vsub.s32 %v2552, %v2554
    %v2556 = vrot.slane %v2549, %v2555
    %v2557 = vcombine.low %v2477, %v2478
    %v2559 = vunpack.c.l.s4 1983009808
    %v2560 = vunpack.c.0.s8 %v2559
    %v2561 = vlaneseq
    %v2562 = vshrl.u32 %v2561, 7
    %v2563 = vsub.s32 %v2560, %v2562
    %v2564 = vrot.slane %v2557, %v2563
    %v2565 = vcombine.low %v2469, %v2476
    %v2567 = vunpack.c.l.s4 1983009808
    %v2568 = vunpack.c.0.s8 %v2567
    %v2569 = vlaneseq
    %v2570 = vshrl.u32 %v2569, 7
    %v2571 = vsub.s32 %v2568, %v2570
    %v2572 = vrot.slane %v2565, %v2571
    %v2573 = vcombine.low %v2479, %v2480
    %v2575 = vunpack.c.l.s4 1983009808
    %v2576 = vunpack.c.0.s8 %v2575
    %v2577 = vlaneseq
    %v2578 = vshrl.u32 %v2577, 7
    %v2579 = vsub.s32 %v2576, %v2578
    %v2580 = vrot.slane %v2573, %v2579
    %v2581 = vcombine.low %v2556, %v2564
    %v2582 = vcombine.high %v2556, %v2564
    %v2584 = vunpack.c.l.s4 1934713408
    %v2585 = vunpack.c.0.s8 %v2584
    %v2586 = vlaneseq
    %v2587 = vshrl.u32 %v2586, 7
    %v2588 = vsub.s32 %v2585, %v2587
    %v2589 = vrot.slane %v2581, %v2588
    %v2591 = vunpack.c.l.s4 1934713408
    %v2592 = vunpack.c.0.s8 %v2591
    %v2593 = vlaneseq
    %v2594 = vshrl.u32 %v2593, 7
    %v2595 = vsub.s32 %v2592, %v2594
    %v2596 = vrot.slane %v2582, %v2595
    %v2597 = vcombine.low %v2572, %v2580
    %v2598 = vcombine.high %v2572, %v2580
    %v2600 = vunpack.c.l.s4 1934713408
    %v2601 = vunpack.c.0.s8 %v2600
    %v2602 = vlaneseq
    %v2603 = vshrl.u32 %v2602, 7
    %v2604 = vsub.s32 %v2601, %v2603
    %v2605 = vrot.slane %v2597, %v2604
    %v2607 = vunpack.c.l.s4 1934713408
    %v2608 = vunpack.c.0.s8 %v2607
    %v2609 = vlaneseq
    %v2610 = vshrl.u32 %v2609, 7
    %v2611 = vsub.s32 %v2608, %v2610
    %v2612 = vrot.slane %v2598, %v2611
    %v2613 = vcombine.low %v2589, %v2605
    %v2614 = vcombine.high %v2589, %v2605
    %v2615 = vcombine.low %v2596, %v2612
    %v2616 = vcombine.high %v2596, %v2612
    %2619 = vrot.lane.b32.xlu0 %v2546, 8
    %v2620 = vpop.permute.xlu0 %2619
    %2621 = vrot.lane.b32.xlu0 %v2614, 8
    %v2622 = vpop.permute.xlu0 %2621
    %2627 = vrot.lane.b32.xlu0 %v2547, 16
    %v2628 = vpop.permute.xlu0 %2627
    %2629 = vrot.lane.b32.xlu0 %v2615, 16
    %v2630 = vpop.permute.xlu0 %2629
    %2635 = vrot.lane.b32.xlu0 %v2548, 24
    %v2636 = vpop.permute.xlu0 %2635
    %2637 = vrot.lane.b32.xlu0 %v2616, 24
    %v2638 = vpop.permute.xlu0 %2637
    %v2641 = vsel %vm1064, %v2545, %v2620
    %v2642 = vsel %vm1064, %v2613, %v2622
    %vm2643 = vcmask 130048
    %v2644 = vsel %vm2643, %v2641, %v2628
    %v2645 = vsel %vm2643, %v2642, %v2630
    %vm2646 = vcmask 195584
    %v2647 = vsel %vm2646, %v2644, %v2636
    %v2648 = vsel %vm2646, %v2645, %v2638
    %v2649 = vsel %vm98, %v2647, 0.0
    %v2650 = vsel %vm98, %v2648, 0.0
    %v2651 = vadd.f32 %v2649, %v2650
    %v2652 = vmul.f32 %v2651, 0.5
    %v2653 = vld [vmem:[#allocation8] sm:$0xff]
    %v2654 = vld [vmem:[#allocation8 + $0x8] sm:$0xff]
    %v2655 = vld [vmem:[#allocation8 + $0x10] sm:$0xff]
    %v2656 = vld [vmem:[#allocation8 + $0x18] sm:$0xff]
    %v2657 = vld [vmem:[#allocation10] sm:$0x1]
    %v2659 = vlaneseq
    %v2660 = vshrl.u32 %v2659, 7
    %v2661 = vsub.s32 0, %v2660
    %v2662 = vrot.slane %v2657, %v2661
    %v2665 = vsel %vm98, %v2652, 0
    %2667 = vmatprep.subr.mxu0 0.0
    %2668 = vmatpush1.msra.mxu0 %v2653
    %2669 = vmatprep.subr.mxu0 0.0
    %2670 = vmatpush1.msra.mxu0 %v2654
    %2671 = vmatprep.subr.mxu0 0.0
    %2672 = vmatpush1.msra.mxu0 %v2655
    %2673 = vmatprep.subr.mxu0 0.0
    %2674 = vmatpush1.msra.mxu0 %v2656
    %2675 = vmatprep.subr.mxu0 0.0
    %2676 = vmatpush1.msra.mxu0 0.0
    %2677 = vmatprep.subr.mxu0 0.0
    %2678 = vmatpush1.msra.mxu0 0.0
    %2679 = vmatprep.subr.mxu0 0.0
    %2680 = vmatpush1.msra.mxu0 0.0
    %2681 = vmatprep.subr.mxu0 0.0
    %2682 = vmatpush1.msra.mxu0 0.0
    %2683 = vmatprep.subr.mxu0 0.0
    %2684 = vmatpush1.msra.mxu0 0.0
    %2685 = vmatprep.subr.mxu0 0.0
    %2686 = vmatpush1.msra.mxu0 0.0
    %2687 = vmatprep.subr.mxu0 0.0
    %2688 = vmatpush1.msra.mxu0 0.0
    %2689 = vmatprep.subr.mxu0 0.0
    %2690 = vmatpush1.msra.mxu0 0.0
    %2691 = vmatprep.subr.mxu0 0.0
    %2692 = vmatpush1.msra.mxu0 0.0
    %2693 = vmatprep.subr.mxu0 0.0
    %2694 = vmatpush1.msra.mxu0 0.0
    %2695 = vmatprep.subr.mxu0 0.0
    %2696 = vmatpush1.msra.mxu0 0.0
    %2697 = vmatprep.subr.mxu0 0.0
    %2698 = vmatpush1.msra.mxu0 0.0
    %2699 = vmatprep.subr.mxu0 0.0
    %2700 = vmatpush1.msra.mxu0 0.0
    %2701 = vmatprep.subr.mxu0 0.0
    %2702 = vmatpush1.msra.mxu0 0.0
    %2703 = vmatprep.subr.mxu0 0.0
    %2704 = vmatpush1.msra.mxu0 0.0
    %2705 = vmatprep.subr.mxu0 0.0
    %2706 = vmatpush1.msra.mxu0 0.0
    %2707 = vmatprep.subr.mxu0 0.0
    %2708 = vmatpush1.msra.mxu0 0.0
    %2709 = vmatprep.subr.mxu0 0.0
    %2710 = vmatpush1.msra.mxu0 0.0
    %2711 = vmatprep.subr.mxu0 0.0
    %2712 = vmatpush1.msra.mxu0 0.0
    %2713 = vmatprep.subr.mxu0 0.0
    %2714 = vmatpush1.msra.mxu0 0.0
    %2715 = vmatprep.subr.mxu0 0.0
    %2716 = vmatpush1.msra.mxu0 0.0
    %2717 = vmatprep.subr.mxu0 0.0
    %2718 = vmatpush1.msra.mxu0 0.0
    %2719 = vmatprep.subr.mxu0 0.0
    %2720 = vmatpush1.msra.mxu0 0.0
    %2721 = vmatprep.subr.mxu0 0.0
    %2722 = vmatpush1.msra.mxu0 0.0
    %2723 = vmatprep.subr.mxu0 0.0
    %2724 = vmatpush1.msra.mxu0 0.0
    %2725 = vmatprep.subr.mxu0 0.0
    %2726 = vmatpush1.msra.mxu0 0.0
    %2727 = vmatprep.subr.mxu0 0.0
    %2728 = vmatpush1.msra.mxu0 0.0
    %2729 = vmatprep.subr.mxu0 0.0
    %2730 = vmatpush1.msra.mxu0 0.0
    %2731 = vmatprep.mubr.f32.mxu0 0.0
    %2732 = vmatmul.mubr.f32.gmra.mrb[0].mxu0 %v2665
    %v2733 = vpop.f32.mrb[0].mxu0
    %v2734 = vadd.f32 %v2662, %v2733
    %v2735 = vpop.f32.mrb[0].mxu0
    %2736 = vdwg.mxu0
    %2737 = vst.msk [vmem:[#allocation11] sm:$0xff] %vm98, %v2734
    // Predicated region
    $region42: #{tpu_custom_call.1} parent=1 // pred_check
      _
    $region43: #{tpu_custom_call.1} parent=1 // pred_check_branch
      %2739 = sbr.rel (0) target = $region45
    $region44: #{tpu_custom_call.1} parent=1 // pred_region
      %s2741 = ssub.s32 128, 128
      %2742 = vsyncadd [#allocation4], %s2741
      %s2744 = sshll.u32 [#allocation11], 4
      %s2745 = int_to_ptr.vmem [resolvable:$true] %s2744
      %2747 = dma.vmem_to_hbm [thread:$0]  %s2745, 128, %s5, [#allocation4]
    $region45: #{tpu_custom_call.1} parent=1 // pred_fallthru
      _
    // Predicated region
    $region46: #{tpu_custom_call.1} parent=1 // pred_check
      _
    $region47: #{tpu_custom_call.1} parent=1 // pred_check_branch
      %2749 = sbr.rel (0) target = $region49
    $region48: #{tpu_custom_call.1} parent=1 // pred_region
      %2750 = dma.done [#allocation4], 128
    $region49: #{tpu_custom_call.1} parent=1 // pred_fallthru
      _
    %2751 = vsyncpa [#allocation3], 1
    %2752 = vsyncpa [#allocation6], 1
    %2753 = vsyncpa [#allocation9], 1
    %2754 = vsyncpa [#allocation4], 1

</llo_original>
